<compile_context>
chip_gen: v6e
topology: v6e:2x2x1
jax: 0.10.0
libtpu: 0.0.40
codegen_flags: <defaults>
</compile_context>

<pallas_src>
import functools

import jax
import jax.numpy as jnp
from jax import lax
from jax.experimental import pallas as pl
from jax.experimental.pallas import tpu as pltpu


def transition_kernel(x_ref, w_ref, b_ref, o_ref, *, conv_precision):
    # x_ref: (1, 4, C, Sp)  four 2x2-pool phases of the input; pooled spatial (Sp) in lanes
    # w_ref: (Ot, C)        1x1-conv weights with the BatchNorm scale folded in (io_dtype)
    # b_ref: (Ot, 1)        conv bias + BatchNorm shift (f32), broadcast along lanes
    # o_ref: (1, Ot, Sp)    pooled output: channels in sublanes, pooled spatial in lanes
    w = w_ref[...]
    b = jnp.broadcast_to(b_ref[...], (o_ref.shape[1], o_ref.shape[2]))  # hoisted once
    acc = None
    for q in range(4):                                   # static unroll: 4 MXU matmuls
        y = jnp.dot(w, x_ref[0, q],
                    preferred_element_type=jnp.float32,
                    precision=conv_precision)            # (Ot, Sp), f32 accumulation
        y = jnp.maximum(y + b, 0.0)                      # VPU: bias + ReLU (pre-pool!)
        acc = y if acc is None else acc + y              # VPU: pool accumulation
    o_ref[0] = (acc * 0.25).astype(o_ref.dtype)          # 2x2 average, cast to io_dtype


def densenet_transition_block(x_nchw, w_oihw, conv_bias, gamma, beta,
                              eps=1e-5, io_dtype=jnp.bfloat16, out_dtype=None,
                              o_tile=None):
    """Forward of DenseNetTransitionBlock: Conv1x1 -> BatchNorm2d(train) -> ReLU -> AvgPool2x2."""
    N, C, H, W = x_nchw.shape
    O = w_oihw.shape[0]
    assert w_oihw.shape == (O, C, 1, 1)
    assert H % 2 == 0 and W % 2 == 0
    Hp, Wp = H // 2, W // 2
    Sp = Hp * Wp
    hi = lax.Precision.HIGHEST
    if out_dtype is None:
        out_dtype = io_dtype

    x_f32 = x_nchw.astype(jnp.float32)
    w2 = w_oihw.reshape(O, C).astype(jnp.float32)
    b_f32 = conv_bias.astype(jnp.float32)

    # ---- BatchNorm2d batch statistics of the 1x1-conv output, computed analytically.
    # One Gram-matrix dot_general over x (no transpose / centering copies):
    #   mean_y = W m_x + b ,   var_y[o] = W[o] Cov_x W[o]^T   (biased, PyTorch train mode)
    M = N * H * W
    mean_x = jnp.sum(x_f32, axis=(0, 2, 3)) / M                                   # (C,)
    gram = lax.dot_general(x_f32, x_f32,
                           dimension_numbers=(((0, 2, 3), (0, 2, 3)), ((), ())),
                           precision=hi)                                          # (C, C)
    cov_x = gram / M - jnp.outer(mean_x, mean_x)                                  # (C, C)
    mean_y = jnp.dot(w2, mean_x, precision=hi) + b_f32                            # (O,)
    var_y = jnp.einsum("oc,cd,od->o", w2, cov_x, w2, precision=hi)                # (O,)
    scale = gamma.astype(jnp.float32) * lax.rsqrt(var_y + eps)
    shift = beta.astype(jnp.float32) - mean_y * scale

    # Fold BN into the conv:  scale*(Wx + b) + shift = (scale*W) x + (scale*b + shift)
    w_fold = (w2 * scale[:, None]).astype(io_dtype)                               # (O, C)
    b_fold = (b_f32 * scale + shift).reshape(O, 1).astype(jnp.float32)            # (O, 1)

    # ---- Pre-split x into the four 2x2-pool phases (one XLA relayout pass, at io_dtype):
    #   x_q[n, 2a+b, c, hp*Wp + wp] = x[n, c, 2hp+a, 2wp+b]
    # This removes all pooling work from the MXU: the kernel just averages 4 ReLU'd convs.
    # TODO(synk): for bf16, padding C to a multiple of 16 (sublane packing) would avoid
    # packed-row padding on the x tile; skipped to avoid an extra HBM pass over x.
    x_q = (x_nchw.astype(io_dtype)
           .reshape(N, C, Hp, 2, Wp, 2)
           .transpose(0, 3, 5, 1, 2, 4)
           .reshape(N, 4, C, Sp))

    # ---- output-channel tiling (replaces the old, unusable row tiling).
    if o_tile is None:
        o_tile = O
        if N == 1 and O % 16 == 0:
            o_tile = O // 2            # >= 2 parallel grid steps so both v7x TCs get work
    assert O % o_tile == 0
    if o_tile != O:
        assert o_tile % 8 == 0, "partial output-channel tiles must be a multiple of 8"
    n_ob = O // o_tile

    # ---- explicit VMEM budget: actual tile footprint, capped at 75% of device VMEM.
    isz = jnp.dtype(io_dtype).itemsize
    osz = jnp.dtype(out_dtype).itemsize
    need = (2 * 4 * C * Sp * isz                    # x tile, double-buffered
            + 2 * o_tile * C * isz + 2 * o_tile * 4  # folded weights / bias
            + 2 * o_tile * Sp * osz                  # output tile, double-buffered
            + 10 * o_tile * Sp * 4)                  # f32 intermediates / headroom
    try:
        vmem_cap = pltpu.get_tpu_info().vmem_capacity_bytes
    except Exception:
        vmem_cap = 64 * 1024 * 1024                  # conservative (v7x per-core VMEM)
    vmem_limit = int(min(max(int(1.5 * need), 32 * 1024 * 1024), int(0.75 * vmem_cap)))

    # bf16 operands -> single MXU pass (DEFAULT); f32 path stays exact with HIGHEST.
    conv_precision = hi if io_dtype == jnp.float32 else lax.Precision.DEFAULT
    kernel = functools.partial(transition_kernel, conv_precision=conv_precision)

    out_flat = pl.pallas_call(
        kernel,
        out_shape=jax.ShapeDtypeStruct((N, O, Sp), out_dtype),
        grid_spec=pltpu.PrefetchScalarGridSpec(
            num_scalar_prefetch=0,
            grid=(N, n_ob),
            in_specs=[
                pl.BlockSpec((1, 4, C, Sp), lambda n, ob: (n, 0, 0, 0)),
                pl.BlockSpec((o_tile, C), lambda n, ob: (ob, 0)),
                pl.BlockSpec((o_tile, 1), lambda n, ob: (ob, 0)),
            ],
            out_specs=pl.BlockSpec((1, o_tile, Sp), lambda n, ob: (n, ob, 0)),
        ),
        compiler_params=pltpu.CompilerParams(
            dimension_semantics=("parallel", "parallel"),
            vmem_limit_bytes=vmem_limit),
    )(x_q, w_fold, b_fold)

    return out_flat.reshape(N, O, Hp, Wp)   # already NCHW


def densenet_transition_block_reference(x, w, b, gamma, beta, eps=1e-5):
    y = lax.conv_general_dilated(
        x, w, window_strides=(1, 1), padding="VALID",
        dimension_numbers=("NCHW", "OIHW", "NCHW"),
        precision=lax.Precision.HIGHEST) + b[None, :, None, None]
    mean = jnp.mean(y, axis=(0, 2, 3), keepdims=True)
    var = jnp.mean((y - mean) ** 2, axis=(0, 2, 3), keepdims=True)     # biased (PyTorch train)
    y = (y - mean) / jnp.sqrt(var + eps) * gamma[None, :, None, None] + beta[None, :, None, None]
    y = jnp.maximum(y, 0.0)
    N, O, H, W = y.shape
    return y.reshape(N, O, H // 2, 2, W // 2, 2).mean(axis=(3, 5))


if __name__ == "__main__":
    N, C_in, C_out, H, W = 2, 8, 4, 16, 16

    key = jax.random.PRNGKey(0)
    kx, kw, kb, kg, kbe = jax.random.split(key, 5)
    x = jax.random.normal(kx, (N, C_in, H, W), dtype=jnp.float32)
    w = 0.35 * jax.random.normal(kw, (C_out, C_in, 1, 1), dtype=jnp.float32)   # OIHW, 1x1
    b = 0.05 * jax.random.normal(kb, (C_out,), dtype=jnp.float32)
    gamma = 1.0 + 0.1 * jax.random.normal(kg, (C_out,), dtype=jnp.float32)
    beta = 0.1 * jax.random.normal(kbe, (C_out,), dtype=jnp.float32)

    ref = densenet_transition_block_reference(x, w, b, gamma, beta)

    # Exact-check path (f32 operands, HIGHEST precision, f32 output).
    out_f32 = densenet_transition_block(x, w, b, gamma, beta, io_dtype=jnp.float32)
    # Fast path (bf16 operands and output, f32 accumulation) -- the production default.
    out_bf16 = densenet_transition_block(x, w, b, gamma, beta, io_dtype=jnp.bfloat16)
    jax.block_until_ready((out_f32, out_bf16))

    assert out_f32.shape == (N, C_out, H // 2, W // 2), out_f32.shape
    assert out_f32.dtype == jnp.float32
    assert out_bf16.dtype == jnp.bfloat16
    assert jnp.allclose(out_f32, ref, rtol=1e-3, atol=1e-3), \
        float(jnp.max(jnp.abs(out_f32 - ref)))
    # bf16 inputs/weights/output with f32 accumulation: looser tolerance for quantization.
    assert jnp.allclose(out_bf16.astype(jnp.float32), ref, rtol=3e-2, atol=3e-2), \
        float(jnp.max(jnp.abs(out_bf16.astype(jnp.float32) - ref)))

    print("KERNEL_OK")
</pallas_src>

<mosaic_0001>
module attributes {stable_mosaic.version = 11 : i64} {
  func.func @transition_kernel(%arg0: i32, %arg1: i32, %arg2: memref<1x4x8x64xf32, #tpu.memory_space<vmem>>, %arg3: memref<4x8xf32, #tpu.memory_space<vmem>>, %arg4: memref<4x1xf32, #tpu.memory_space<vmem>>, %arg5: memref<1x4x64xf32, #tpu.memory_space<vmem>>) attributes {dimension_semantics = [#tpu.dimension_semantics<parallel>, #tpu.dimension_semantics<parallel>], iteration_bounds = array<i64: 2, 1>, scalar_prefetch = 0 : i64, scratch_operands = 0 : i64, tpu.core_type = #tpu.core_type<tc>, window_params = [{transform_indices = @transform_0, window_bounds = array<i64: 1, 4, 8, 64>}, {transform_indices = @transform_1, window_bounds = array<i64: 4, 8>}, {transform_indices = @transform_2, window_bounds = array<i64: 4, 1>}, {transform_indices = @transform_3, window_bounds = array<i64: 1, 4, 64>}]} {
    %c0 = arith.constant 0 : index
    %c0_0 = arith.constant 0 : index
    %0 = vector.load %arg3[%c0, %c0_0] : memref<4x8xf32, #tpu.memory_space<vmem>>, vector<4x8xf32>
    %c0_1 = arith.constant 0 : index
    %c0_2 = arith.constant 0 : index
    %1 = vector.load %arg4[%c0_1, %c0_2] : memref<4x1xf32, #tpu.memory_space<vmem>>, vector<4x1xf32>
    %2 = vector.shape_cast %1 : vector<4x1xf32> to vector<4x1xf32>
    %3 = vector.broadcast %2 : vector<4x1xf32> to vector<4x64xf32>
    %c0_3 = arith.constant 0 : index
    %c0_4 = arith.constant 0 : index
    %c0_5 = arith.constant 0 : index
    %c0_6 = arith.constant 0 : index
    %4 = vector.load %arg2[%c0_3, %c0_4, %c0_5, %c0_6] : memref<1x4x8x64xf32, #tpu.memory_space<vmem>>, vector<1x1x8x64xf32>
    %5 = vector.shape_cast %4 : vector<1x1x8x64xf32> to vector<8x64xf32>
    %cst = arith.constant dense<0.000000e+00> : vector<4x64xf32>
    %6 = tpu.matmul %0, %5, %cst {dimension_numbers = #tpu.dot_dimension_numbers<[1], [0], [0], [1], [0, 0, 1, 1], [], []>, precision = #tpu.contract_precision<fp32>} : vector<4x8xf32>, vector<8x64xf32>, vector<4x64xf32> -> vector<4x64xf32>
    %7 = arith.addf %6, %3 : vector<4x64xf32>
    %cst_7 = arith.constant 0.000000e+00 : f32
    %8 = vector.broadcast %cst_7 : f32 to vector<4x64xf32>
    %9 = arith.maximumf %7, %8 : vector<4x64xf32>
    %c0_8 = arith.constant 0 : index
    %c1 = arith.constant 1 : index
    %c0_9 = arith.constant 0 : index
    %c0_10 = arith.constant 0 : index
    %10 = vector.load %arg2[%c0_8, %c1, %c0_9, %c0_10] : memref<1x4x8x64xf32, #tpu.memory_space<vmem>>, vector<1x1x8x64xf32>
    %11 = vector.shape_cast %10 : vector<1x1x8x64xf32> to vector<8x64xf32>
    %cst_11 = arith.constant dense<0.000000e+00> : vector<4x64xf32>
    %12 = tpu.matmul %0, %11, %cst_11 {dimension_numbers = #tpu.dot_dimension_numbers<[1], [0], [0], [1], [0, 0, 1, 1], [], []>, precision = #tpu.contract_precision<fp32>} : vector<4x8xf32>, vector<8x64xf32>, vector<4x64xf32> -> vector<4x64xf32>
    %13 = arith.addf %12, %3 : vector<4x64xf32>
    %cst_12 = arith.constant 0.000000e+00 : f32
    %14 = vector.broadcast %cst_12 : f32 to vector<4x64xf32>
    %15 = arith.maximumf %13, %14 : vector<4x64xf32>
    %16 = arith.addf %9, %15 : vector<4x64xf32>
    %c0_13 = arith.constant 0 : index
    %c2 = arith.constant 2 : index
    %c0_14 = arith.constant 0 : index
    %c0_15 = arith.constant 0 : index
    %17 = vector.load %arg2[%c0_13, %c2, %c0_14, %c0_15] : memref<1x4x8x64xf32, #tpu.memory_space<vmem>>, vector<1x1x8x64xf32>
    %18 = vector.shape_cast %17 : vector<1x1x8x64xf32> to vector<8x64xf32>
    %cst_16 = arith.constant dense<0.000000e+00> : vector<4x64xf32>
    %19 = tpu.matmul %0, %18, %cst_16 {dimension_numbers = #tpu.dot_dimension_numbers<[1], [0], [0], [1], [0, 0, 1, 1], [], []>, precision = #tpu.contract_precision<fp32>} : vector<4x8xf32>, vector<8x64xf32>, vector<4x64xf32> -> vector<4x64xf32>
    %20 = arith.addf %19, %3 : vector<4x64xf32>
    %cst_17 = arith.constant 0.000000e+00 : f32
    %21 = vector.broadcast %cst_17 : f32 to vector<4x64xf32>
    %22 = arith.maximumf %20, %21 : vector<4x64xf32>
    %23 = arith.addf %16, %22 : vector<4x64xf32>
    %c0_18 = arith.constant 0 : index
    %c3 = arith.constant 3 : index
    %c0_19 = arith.constant 0 : index
    %c0_20 = arith.constant 0 : index
    %24 = vector.load %arg2[%c0_18, %c3, %c0_19, %c0_20] : memref<1x4x8x64xf32, #tpu.memory_space<vmem>>, vector<1x1x8x64xf32>
    %25 = vector.shape_cast %24 : vector<1x1x8x64xf32> to vector<8x64xf32>
    %cst_21 = arith.constant dense<0.000000e+00> : vector<4x64xf32>
    %26 = tpu.matmul %0, %25, %cst_21 {dimension_numbers = #tpu.dot_dimension_numbers<[1], [0], [0], [1], [0, 0, 1, 1], [], []>, precision = #tpu.contract_precision<fp32>} : vector<4x8xf32>, vector<8x64xf32>, vector<4x64xf32> -> vector<4x64xf32>
    %27 = arith.addf %26, %3 : vector<4x64xf32>
    %cst_22 = arith.constant 0.000000e+00 : f32
    %28 = vector.broadcast %cst_22 : f32 to vector<4x64xf32>
    %29 = arith.maximumf %27, %28 : vector<4x64xf32>
    %30 = arith.addf %23, %29 : vector<4x64xf32>
    %cst_23 = arith.constant 2.500000e-01 : f32
    %31 = vector.broadcast %cst_23 : f32 to vector<4x64xf32>
    %32 = arith.mulf %30, %31 : vector<4x64xf32>
    %c0_24 = arith.constant 0 : index
    %c0_25 = arith.constant 0 : index
    %c0_26 = arith.constant 0 : index
    %33 = vector.load %arg5[%c0_24, %c0_25, %c0_26] : memref<1x4x64xf32, #tpu.memory_space<vmem>>, vector<1x4x64xf32>
    %34 = vector.shape_cast %33 : vector<1x4x64xf32> to vector<4x64xf32>
    %35 = vector.shape_cast %32 : vector<4x64xf32> to vector<1x4x64xf32>
    tpu.vector_store %arg5[%c0_24, %c0_25, %c0_26], %35 {strides = array<i32>} : memref<1x4x64xf32, #tpu.memory_space<vmem>>, vector<1x4x64xf32>,
    return
  }
  func.func @transform_0(%arg0: i32, %arg1: i32) -> (i32, i32, i32, i32) {
    %c0_i32 = arith.constant 0 : i32
    %c0_i32_0 = arith.constant 0 : i32
    %c0_i32_1 = arith.constant 0 : i32
    %c0_i32_2 = arith.constant 0 : i32
    return %arg0, %c0_i32, %c0_i32_0, %c0_i32_1 : i32, i32, i32, i32
  }
  func.func @transform_1(%arg0: i32, %arg1: i32) -> (i32, i32) {
    %c0_i32 = arith.constant 0 : i32
    %c0_i32_0 = arith.constant 0 : i32
    return %arg1, %c0_i32 : i32, i32
  }
  func.func @transform_2(%arg0: i32, %arg1: i32) -> (i32, i32) {
    %c0_i32 = arith.constant 0 : i32
    %c0_i32_0 = arith.constant 0 : i32
    return %arg1, %c0_i32 : i32, i32
  }
  func.func @transform_3(%arg0: i32, %arg1: i32) -> (i32, i32, i32) {
    %c0_i32 = arith.constant 0 : i32
    %c0_i32_0 = arith.constant 0 : i32
    return %arg0, %arg1, %c0_i32 : i32, i32, i32
  }
}

</mosaic_0001>

<llo_original>
// kernel: tpu_custom_call.1
$region0: #{tpu_custom_call.1}
  #allocation0 [shape = 'u32[]', space=smem, size = 0x4, offset = 0x4, fixed_abs, tag = 'smem constant byte address 0x4 - core index']
  #allocation1 [shape = 'u32[144,128]{1,0:T(1,128)}', space=vmem, size = 0x12000, scoped, tag = 'internal scratch']
  %s0 = inlined_call_operand.hbm [shape: f32[2,4,8,64], index: 0, kind: input, shape index: {}]
  %s1 = inlined_call_operand.vmem [shape: f32[4,8], index: 1, kind: input, shape index: {}]
  %s2 = inlined_call_operand.vmem [shape: f32[4,1], index: 2, kind: input, shape index: {}]
  %s3 = inlined_call_operand.hbm [shape: f32[2,4,64], index: 3, kind: output, shape index: {}]
  %s4 = sld [smem:[#allocation0]]
  $region49: #{tpu_custom_call.1} parent=0
    _
  %s6 = ssub.s32 1, %s4
  %s7 = scalar_select 0, %s6, %s4
  $region1: #{tpu_custom_call.1} parent=0
    #allocation2 [shape = 'u8[32768]{0}', space=vmem, size = 0x8000, scoped, tag = 'input window, operand 0']
    #allocation3 [shape = 's32[2]{0}', space=sflag, size = 0x8, scoped, tag = 'scoped memory for tpu_custom_call.1']
    #allocation4 [shape = 's32[2]{0}', space=sflag, size = 0x8, scoped, tag = 'scoped memory for tpu_custom_call.1']
    #allocation5 [shape = 'u8[4096]{0}', space=vmem, size = 0x1000, scoped, tag = 'output window, operand 0']
    %8 = vsyncpa [#allocation3], 0
    %s9 = scalar_lea.sflag [#allocation3], 1
    %10 = vsyncpa %s9, 0
    %11 = vsyncpa [#allocation4], 0
    %s12 = scalar_lea.sflag [#allocation4], 1
    %13 = vsyncpa %s12, 0
    loop: start=0, step=1, limit=4
    $region2: #{tpu_custom_call.1} parent=1 // loop_pre_header
      _
    $region3: #{tpu_custom_call.1} parent=1 // loop_header
      %s15 = sphi 0, %s19
      %p16 = scmp.ge.s32.totalorder %s15, 4
      %s22 = sphi 0, %s34
      %s23 = sphi 0, %s30
      %s24 = sphi 0, %s22
      %s25 = sphi 0, %s23
      %s26 = sphi 0, %s24
      %s27 = sphi 0, %s25
      %s37 = sphi 0, %s39
      %s40 = sphi 0, %s37
      %s41 = sphi 0, %s40
      %s57 = sphi 0, %s41
      %s63 = sphi 0, %s65
      %s66 = sphi 0, %s63
      %s67 = sphi 0, %s66
      %s83 = sphi 0, %s67
      %s89 = sphi 0, %s91
      %s92 = sphi 0, %s89
      %s93 = sphi 0, %s92
      %s109 = sphi 0, %s93
      %s117 = sphi 0, %s119
      %s120 = sphi 0, %s117
      %s121 = sphi 0, %s120
      %s137 = sphi 0, %s121
    $region4: #{tpu_custom_call.1} parent=1 // loop_header_branch
      %18 = sbr.rel (%p16) target = $region8
    $region5: #{tpu_custom_call.1} parent=1 // loop_body
      %s20 = ssub.s32 %s15, 1
      %s21 = ssub.s32 %s15, 2
      %s28 = sadd.s32 1, %s23
      %p29 = scmp.ge.s32.totalorder %s28, 1
      %s30 = scalar_select %p29, 0, %s28
      %s31 = sadd.s32 1, %s22
      %s32 = scalar_select %p29, %s31, %s22
      %p33 = scmp.ge.s32.totalorder %s32, 2
      %s34 = scalar_select %p33, 0, %s32
      %s35 = ssub.s32 %s22, %s34
      %p36 = scmp.eq.s32.totalorder %s35, 0
      %s38 = sadd.s32 %s37, 1
      %s39 = scalar_select %p36, %s37, %s38
      %p42 = pneg %p36
      %p43 = scmp.eq.s32.totalorder %s15, 1
      %p44 = por %p42, %p43
      %p45 = scmp.ne.s32.totalorder %s37, %s40
      %p46 = scmp.eq.s32.totalorder %s15, 0
      %p47 = por %p45, %p46
      %p48 = scmp.ne.s32.totalorder %s37, %s40
      %p49 = scmp.eq.s32.totalorder %s20, 1
      %p50 = por %p48, %p49
      %p51 = scmp.ne.s32.totalorder %s40, %s41
      %p52 = scmp.eq.s32.totalorder %s20, 0
      %p53 = por %p51, %p52
      %p54 = scmp.ne.s32.totalorder %s40, %s41
      %p55 = scmp.eq.s32.totalorder %s21, 1
      %p56 = por %p54, %p55
      %p58 = scmp.ne.s32.totalorder %s41, %s57
      %p59 = scmp.eq.s32.totalorder %s21, 0
      %p60 = por %p58, %p59
      %s61 = ssub.s32 %s23, %s30
      %p62 = scmp.eq.s32.totalorder %s61, 0
      %s64 = sadd.s32 %s63, 1
      %s65 = scalar_select %p62, %s63, %s64
      %p68 = pneg %p62
      %p69 = scmp.eq.s32.totalorder %s15, 1
      %p70 = por %p68, %p69
      %p71 = scmp.ne.s32.totalorder %s63, %s66
      %p72 = scmp.eq.s32.totalorder %s15, 0
      %p73 = por %p71, %p72
      %p74 = scmp.ne.s32.totalorder %s63, %s66
      %p75 = scmp.eq.s32.totalorder %s20, 1
      %p76 = por %p74, %p75
      %p77 = scmp.ne.s32.totalorder %s66, %s67
      %p78 = scmp.eq.s32.totalorder %s20, 0
      %p79 = por %p77, %p78
      %p80 = scmp.ne.s32.totalorder %s66, %s67
      %p81 = scmp.eq.s32.totalorder %s21, 1
      %p82 = por %p80, %p81
      %p84 = scmp.ne.s32.totalorder %s67, %s83
      %p85 = scmp.eq.s32.totalorder %s21, 0
      %p86 = por %p84, %p85
      %s87 = ssub.s32 %s23, %s30
      %p88 = scmp.eq.s32.totalorder %s87, 0
      %s90 = sadd.s32 %s89, 1
      %s91 = scalar_select %p88, %s89, %s90
      %p94 = pneg %p88
      %p95 = scmp.eq.s32.totalorder %s15, 1
      %p96 = por %p94, %p95
      %p97 = scmp.ne.s32.totalorder %s89, %s92
      %p98 = scmp.eq.s32.totalorder %s15, 0
      %p99 = por %p97, %p98
      %p100 = scmp.ne.s32.totalorder %s89, %s92
      %p101 = scmp.eq.s32.totalorder %s20, 1
      %p102 = por %p100, %p101
      %p103 = scmp.ne.s32.totalorder %s92, %s93
      %p104 = scmp.eq.s32.totalorder %s20, 0
      %p105 = por %p103, %p104
      %p106 = scmp.ne.s32.totalorder %s92, %s93
      %p107 = scmp.eq.s32.totalorder %s21, 1
      %p108 = por %p106, %p107
      %p110 = scmp.ne.s32.totalorder %s93, %s109
      %p111 = scmp.eq.s32.totalorder %s21, 0
      %p112 = por %p110, %p111
      %s113 = ssub.s32 %s22, %s34
      %s114 = ssub.s32 %s23, %s30
      %s115 = sor.u32 %s113, %s114
      %p116 = scmp.eq.s32.totalorder %s115, 0
      %s118 = sadd.s32 %s117, 1
      %s119 = scalar_select %p116, %s117, %s118
      %p122 = pneg %p116
      %p123 = scmp.eq.s32.totalorder %s15, 1
      %p124 = por %p122, %p123
      %p125 = scmp.ne.s32.totalorder %s117, %s120
      %p126 = scmp.eq.s32.totalorder %s15, 0
      %p127 = por %p125, %p126
      %p128 = scmp.ne.s32.totalorder %s117, %s120
      %p129 = scmp.eq.s32.totalorder %s20, 1
      %p130 = por %p128, %p129
      %p131 = scmp.ne.s32.totalorder %s120, %s121
      %p132 = scmp.eq.s32.totalorder %s20, 0
      %p133 = por %p131, %p132
      %p134 = scmp.ne.s32.totalorder %s120, %s121
      %p135 = scmp.eq.s32.totalorder %s21, 1
      %p136 = por %p134, %p135
      %p138 = scmp.ne.s32.totalorder %s121, %s137
      %p139 = scmp.eq.s32.totalorder %s21, 0
      %p140 = por %p138, %p139
      %p141 = scmp.le.s32.totalorder 1, %s15
      %p142 = scmp.lt.s32.totalorder %s15, 3
      %p143 = pnand %p141, %p142
      %p144 = pneg %p143
      // Predicated region
      $region9: #{tpu_custom_call.1} parent=5 // pred_check
        _
      $region10: #{tpu_custom_call.1} parent=5 // pred_check_branch
        %146 = sbr.rel (%p143) target = $region12
      $region11: #{tpu_custom_call.1} parent=5 // pred_region
        %s147 = ssub.s32 %s15, 1
        // Predicated region
        $region13: #{tpu_custom_call.1} parent=11 // pred_check
          %p148 = pneg %p79
        $region14: #{tpu_custom_call.1} parent=11 // pred_check_branch
          %150 = sbr.rel (%p148) target = $region16
        $region15: #{tpu_custom_call.1} parent=11 // pred_region
          %p151 = scmp.lt.s32.totalorder %s25, 0
          %s152 = scalar_select %p151, %s25, 0
          %s153 = smul.addr %s152, 4
          %s154 = scalar_lea.vmem %s1, %s153
        $region16: #{tpu_custom_call.1} parent=11 // pred_fallthru
          _
        // Predicated region
        $region17: #{tpu_custom_call.1} parent=11 // pred_check
          %p155 = pneg %p105
        $region18: #{tpu_custom_call.1} parent=11 // pred_check_branch
          %157 = sbr.rel (%p155) target = $region20
        $region19: #{tpu_custom_call.1} parent=11 // pred_region
          %p158 = scmp.lt.s32.totalorder %s25, 0
          %s159 = scalar_select %p158, %s25, 0
          %s160 = smul.addr %s159, 4
          %s161 = scalar_lea.vmem %s2, %s160
        $region20: #{tpu_custom_call.1} parent=11 // pred_fallthru
          _
      $region12: #{tpu_custom_call.1} parent=5 // pred_fallthru
        _
      %p162 = scmp.lt.s32.totalorder %s15, 2
      // Predicated region
      $region21: #{tpu_custom_call.1} parent=5 // pred_check
        %p163 = pneg %p162
      $region22: #{tpu_custom_call.1} parent=5 // pred_check_branch
        %165 = sbr.rel (%p163) target = $region24
      $region23: #{tpu_custom_call.1} parent=5 // pred_region
        // Predicated region
        $region25: #{tpu_custom_call.1} parent=23 // pred_check
          %p166 = pneg %p47
        $region26: #{tpu_custom_call.1} parent=23 // pred_check_branch
          %168 = sbr.rel (%p166) target = $region28
        $region27: #{tpu_custom_call.1} parent=23 // pred_region
          %s169 = sand.u32 %s37, 1
          %s170 = scalar_lea.sflag [#allocation3], %s169
          %s171 = sand.u32 %s37, 1
          %s172 = smul.addr %s171, 32
          %s173 = scalar_lea.vmem [#allocation2], %s172
          %s175 = ssub.s32 512, 512
          %176 = vsyncadd %s170, %s175
          %s177 = smul.addr %s22, 4
          %s178 = smul.addr %s177, 128
          %s179 = scalar_lea.hbm %s0, %s178
          %s180 = sshll.u32 %s173, 4
          %s181 = int_to_ptr.vmem [resolvable:$true] %s180
          %186 = dma.hbm_to_vmem [thread:$0]  %s179, 512, %s181, %s170, 128, 128, 8
        $region28: #{tpu_custom_call.1} parent=23 // pred_fallthru
          _
      $region24: #{tpu_custom_call.1} parent=5 // pred_fallthru
        _
      %p187 = scmp.le.s32.totalorder 1, %s15
      %p188 = scmp.lt.s32.totalorder %s15, 3
      %p189 = pnand %p187, %p188
      %p190 = pneg %p189
      // Predicated region
      $region29: #{tpu_custom_call.1} parent=5 // pred_check
        _
      $region30: #{tpu_custom_call.1} parent=5 // pred_check_branch
        %192 = sbr.rel (%p189) target = $region32
      $region31: #{tpu_custom_call.1} parent=5 // pred_region
        %s193 = ssub.s32 %s15, 1
        %s194 = sand.u32 %s40, 1
        %s195 = scalar_lea.sflag [#allocation3], %s194
        %s196 = sand.u32 %s40, 1
        %s197 = smul.addr %s196, 32
        %s198 = scalar_lea.vmem [#allocation2], %s197
        // Predicated region
        $region33: #{tpu_custom_call.1} parent=31 // pred_check
          %p199 = pneg %p53
        $region34: #{tpu_custom_call.1} parent=31 // pred_check_branch
          %201 = sbr.rel (%p199) target = $region36
        $region35: #{tpu_custom_call.1} parent=31 // pred_region
          %202 = dma.done %s195, 512
        $region36: #{tpu_custom_call.1} parent=31 // pred_fallthru
          _
        %s203 = sand.u32 %s40, 1
        %s204 = scalar_lea.sflag [#allocation3], %s203
        %s205 = sand.u32 %s40, 1
        %s206 = smul.addr %s205, 32
        %s207 = scalar_lea.vmem [#allocation2], %s206
        %p208 = pneg %p53
        %p209 = pneg %p50
        %p210 = scmp.lt.s32.totalorder %s25, 0
        %s211 = scalar_select %p210, %s25, 0
        %s212 = smul.addr %s211, 4
        %s213 = scalar_lea.vmem %s1, %s212
        %p214 = pneg %p79
        %p215 = pneg %p76
        %p216 = scmp.lt.s32.totalorder %s25, 0
        %s217 = scalar_select %p216, %s25, 0
        %s218 = smul.addr %s217, 4
        %s219 = scalar_lea.vmem %s2, %s218
        %p220 = pneg %p105
        %p221 = pneg %p102
        %p222 = pneg %p133
        %p223 = pneg %p130
        %s224 = sand.u32 %s120, 1
        %s225 = scalar_lea.sflag [#allocation4], %s224
        %s226 = sand.u32 %s120, 1
        %s227 = smul.addr %s226, 4
        %s228 = scalar_lea.vmem [#allocation5], %s227
        %p229 = scmp.lt.s32.totalorder %s25, 0
        %s230 = scalar_select %p229, %s25, 0
        %s231 = smul.addr %s230, 4
        %s232 = scalar_lea.vmem %s1, %s231
        %p233 = scmp.lt.s32.totalorder %s25, 0
        %s234 = scalar_select %p233, %s25, 0
        %s235 = smul.addr %s234, 4
        %s236 = scalar_lea.vmem %s2, %s235
        %v237 = vld [vmem:[%s232] sm:$0xf]
        %v238 = vld [vmem:[%s236] sm:$0xf]
        %240 = vset.pattern.permute.xlu0 0
        %241 = vperm.xlu0 %240, %v238
        %v242 = vpop.permute.xlu0 %241
        %v244 = vld [vmem:[%s198] sm:$0xff]
        %vm245 = vcmask 64512
        %v247 = vsel %vm245, %v237, 0
        %249 = vmatprep.subr.mxu0 0.0
        %250 = vmatpush1.msra.mxu0 0.0
        %251 = vmatprep.subr.mxu0 0.0
        %252 = vmatpush1.msra.mxu0 0.0
        %253 = vmatprep.subr.mxu0 0.0
        %254 = vmatpush1.msra.mxu0 0.0
        %255 = vmatprep.subr.mxu0 0.0
        %256 = vmatpush1.msra.mxu0 0.0
        %257 = vmatprep.subr.mxu0 0.0
        %258 = vmatpush1.msra.mxu0 0.0
        %259 = vmatprep.subr.mxu0 0.0
        %260 = vmatpush1.msra.mxu0 0.0
        %261 = vmatprep.subr.mxu0 0.0
        %262 = vmatpush1.msra.mxu0 0.0
        %263 = vmatprep.subr.mxu0 0.0
        %264 = vmatpush1.msra.mxu0 0.0
        %265 = vmatprep.subr.mxu0 0.0
        %266 = vmatpush1.msra.mxu0 0.0
        %267 = vmatprep.subr.mxu0 0.0
        %268 = vmatpush1.msra.mxu0 0.0
        %269 = vmatprep.subr.mxu0 0.0
        %270 = vmatpush1.msra.mxu0 0.0
        %271 = vmatprep.subr.mxu0 0.0
        %272 = vmatpush1.msra.mxu0 0.0
        %273 = vmatprep.subr.mxu0 0.0
        %274 = vmatpush1.msra.mxu0 0.0
        %275 = vmatprep.subr.mxu0 0.0
        %276 = vmatpush1.msra.mxu0 0.0
        %277 = vmatprep.subr.mxu0 0.0
        %278 = vmatpush1.msra.mxu0 0.0
        %279 = vmatprep.subr.mxu0 0.0
        %v280 = vand.u32 %v244, 4294901760
        %281 = vmatpush1.msra.mxu0 %v280
        %282 = vmatprep.subr.mxu0 0.0
        %283 = vmatpush2.msra.mxu0 0.0
        %284 = vmatprep.subr.mxu0 0.0
        %285 = vmatpush2.msra.mxu0 0.0
        %286 = vmatprep.subr.mxu0 0.0
        %287 = vmatpush2.msra.mxu0 0.0
        %288 = vmatprep.subr.mxu0 0.0
        %289 = vmatpush2.msra.mxu0 0.0
        %290 = vmatprep.subr.mxu0 0.0
        %291 = vmatpush2.msra.mxu0 0.0
        %292 = vmatprep.subr.mxu0 0.0
        %293 = vmatpush2.msra.mxu0 0.0
        %294 = vmatprep.subr.mxu0 0.0
        %295 = vmatpush2.msra.mxu0 0.0
        %296 = vmatprep.subr.mxu0 0.0
        %297 = vmatpush2.msra.mxu0 0.0
        %298 = vmatprep.subr.mxu0 0.0
        %299 = vmatpush2.msra.mxu0 0.0
        %300 = vmatprep.subr.mxu0 0.0
        %301 = vmatpush2.msra.mxu0 0.0
        %302 = vmatprep.subr.mxu0 0.0
        %303 = vmatpush2.msra.mxu0 0.0
        %304 = vmatprep.subr.mxu0 0.0
        %305 = vmatpush2.msra.mxu0 0.0
        %306 = vmatprep.subr.mxu0 0.0
        %307 = vmatpush2.msra.mxu0 0.0
        %308 = vmatprep.subr.mxu0 0.0
        %309 = vmatpush2.msra.mxu0 0.0
        %310 = vmatprep.subr.mxu0 0.0
        %311 = vmatpush2.msra.mxu0 0.0
        %312 = vmatprep.subr.mxu0 0.0
        %313 = vmatpush2.msra.mxu0 0.0
        %314 = vmatprep.mubr.f32.mxu0 0.0
        %v315 = vand.u32 %v247, 4294901760
        %v316 = vsub.f32 %v247, %v315
        %v317 = vand.u32 %v316, 4294901760
        %v318 = vsub.f32 %v316, %v317
        %v319 = vand.u32 %v318, 4294901760
        %320 = vmatmul.mubr.f32.gmra.mxu0 %v319
        %v321 = vpop.f32.mrf.mxu0
        %v322 = vadd.f32 %v242, %v321
        %v323 = vpop.f32.mrf.mxu0
        %324 = vdwg.mxu0
        %325 = vmatprep.subr.mxu0 0.0
        %326 = vmatpush1.msra.mxu0 0.0
        %327 = vmatprep.subr.mxu0 0.0
        %328 = vmatpush1.msra.mxu0 0.0
        %329 = vmatprep.subr.mxu0 0.0
        %330 = vmatpush1.msra.mxu0 0.0
        %331 = vmatprep.subr.mxu0 0.0
        %332 = vmatpush1.msra.mxu0 0.0
        %333 = vmatprep.subr.mxu0 0.0
        %334 = vmatpush1.msra.mxu0 0.0
        %335 = vmatprep.subr.mxu0 0.0
        %336 = vmatpush1.msra.mxu0 0.0
        %337 = vmatprep.subr.mxu0 0.0
        %338 = vmatpush1.msra.mxu0 0.0
        %339 = vmatprep.subr.mxu0 0.0
        %340 = vmatpush1.msra.mxu0 0.0
        %341 = vmatprep.subr.mxu0 0.0
        %342 = vmatpush1.msra.mxu0 0.0
        %343 = vmatprep.subr.mxu0 0.0
        %344 = vmatpush1.msra.mxu0 0.0
        %345 = vmatprep.subr.mxu0 0.0
        %346 = vmatpush1.msra.mxu0 0.0
        %347 = vmatprep.subr.mxu0 0.0
        %348 = vmatpush1.msra.mxu0 0.0
        %349 = vmatprep.subr.mxu0 0.0
        %350 = vmatpush1.msra.mxu0 0.0
        %351 = vmatprep.subr.mxu0 0.0
        %352 = vmatpush1.msra.mxu0 0.0
        %353 = vmatprep.subr.mxu0 0.0
        %354 = vmatpush1.msra.mxu0 0.0
        %355 = vmatprep.subr.mxu0 0.0
        %v356 = vand.u32 %v244, 4294901760
        %v357 = vsub.f32 %v244, %v356
        %v358 = vand.u32 %v357, 4294901760
        %v359 = vsub.f32 %v357, %v358
        %v360 = vand.u32 %v359, 4294901760
        %361 = vmatpush1.msra.mxu0 %v360
        %362 = vmatprep.subr.mxu0 0.0
        %363 = vmatpush2.msra.mxu0 0.0
        %364 = vmatprep.subr.mxu0 0.0
        %365 = vmatpush2.msra.mxu0 0.0
        %366 = vmatprep.subr.mxu0 0.0
        %367 = vmatpush2.msra.mxu0 0.0
        %368 = vmatprep.subr.mxu0 0.0
        %369 = vmatpush2.msra.mxu0 0.0
        %370 = vmatprep.subr.mxu0 0.0
        %371 = vmatpush2.msra.mxu0 0.0
        %372 = vmatprep.subr.mxu0 0.0
        %373 = vmatpush2.msra.mxu0 0.0
        %374 = vmatprep.subr.mxu0 0.0
        %375 = vmatpush2.msra.mxu0 0.0
        %376 = vmatprep.subr.mxu0 0.0
        %377 = vmatpush2.msra.mxu0 0.0
        %378 = vmatprep.subr.mxu0 0.0
        %379 = vmatpush2.msra.mxu0 0.0
        %380 = vmatprep.subr.mxu0 0.0
        %381 = vmatpush2.msra.mxu0 0.0
        %382 = vmatprep.subr.mxu0 0.0
        %383 = vmatpush2.msra.mxu0 0.0
        %384 = vmatprep.subr.mxu0 0.0
        %385 = vmatpush2.msra.mxu0 0.0
        %386 = vmatprep.subr.mxu0 0.0
        %387 = vmatpush2.msra.mxu0 0.0
        %388 = vmatprep.subr.mxu0 0.0
        %389 = vmatpush2.msra.mxu0 0.0
        %390 = vmatprep.subr.mxu0 0.0
        %391 = vmatpush2.msra.mxu0 0.0
        %392 = vmatprep.subr.mxu0 0.0
        %393 = vmatpush2.msra.mxu0 0.0
        %394 = vmatprep.mubr.f32.mxu0 0.0
        %v395 = vand.u32 %v247, 4294901760
        %396 = vmatmul.mubr.f32.gmra.mxu0 %v395
        %v397 = vpop.f32.mrf.mxu0
        %v398 = vadd.f32 %v322, %v397
        %v399 = vpop.f32.mrf.mxu0
        %400 = vdwg.mxu0
        %401 = vmatprep.subr.mxu0 0.0
        %402 = vmatpush1.msra.mxu0 0.0
        %403 = vmatprep.subr.mxu0 0.0
        %404 = vmatpush1.msra.mxu0 0.0
        %405 = vmatprep.subr.mxu0 0.0
        %406 = vmatpush1.msra.mxu0 0.0
        %407 = vmatprep.subr.mxu0 0.0
        %408 = vmatpush1.msra.mxu0 0.0
        %409 = vmatprep.subr.mxu0 0.0
        %410 = vmatpush1.msra.mxu0 0.0
        %411 = vmatprep.subr.mxu0 0.0
        %412 = vmatpush1.msra.mxu0 0.0
        %413 = vmatprep.subr.mxu0 0.0
        %414 = vmatpush1.msra.mxu0 0.0
        %415 = vmatprep.subr.mxu0 0.0
        %416 = vmatpush1.msra.mxu0 0.0
        %417 = vmatprep.subr.mxu0 0.0
        %418 = vmatpush1.msra.mxu0 0.0
        %419 = vmatprep.subr.mxu0 0.0
        %420 = vmatpush1.msra.mxu0 0.0
        %421 = vmatprep.subr.mxu0 0.0
        %422 = vmatpush1.msra.mxu0 0.0
        %423 = vmatprep.subr.mxu0 0.0
        %424 = vmatpush1.msra.mxu0 0.0
        %425 = vmatprep.subr.mxu0 0.0
        %426 = vmatpush1.msra.mxu0 0.0
        %427 = vmatprep.subr.mxu0 0.0
        %428 = vmatpush1.msra.mxu0 0.0
        %429 = vmatprep.subr.mxu0 0.0
        %430 = vmatpush1.msra.mxu0 0.0
        %431 = vmatprep.subr.mxu0 0.0
        %v432 = vand.u32 %v244, 4294901760
        %v433 = vsub.f32 %v244, %v432
        %434 = vmatpush1.msra.mxu0 %v433
        %435 = vmatprep.subr.mxu0 0.0
        %436 = vmatpush2.msra.mxu0 0.0
        %437 = vmatprep.subr.mxu0 0.0
        %438 = vmatpush2.msra.mxu0 0.0
        %439 = vmatprep.subr.mxu0 0.0
        %440 = vmatpush2.msra.mxu0 0.0
        %441 = vmatprep.subr.mxu0 0.0
        %442 = vmatpush2.msra.mxu0 0.0
        %443 = vmatprep.subr.mxu0 0.0
        %444 = vmatpush2.msra.mxu0 0.0
        %445 = vmatprep.subr.mxu0 0.0
        %446 = vmatpush2.msra.mxu0 0.0
        %447 = vmatprep.subr.mxu0 0.0
        %448 = vmatpush2.msra.mxu0 0.0
        %449 = vmatprep.subr.mxu0 0.0
        %450 = vmatpush2.msra.mxu0 0.0
        %451 = vmatprep.subr.mxu0 0.0
        %452 = vmatpush2.msra.mxu0 0.0
        %453 = vmatprep.subr.mxu0 0.0
        %454 = vmatpush2.msra.mxu0 0.0
        %455 = vmatprep.subr.mxu0 0.0
        %456 = vmatpush2.msra.mxu0 0.0
        %457 = vmatprep.subr.mxu0 0.0
        %458 = vmatpush2.msra.mxu0 0.0
        %459 = vmatprep.subr.mxu0 0.0
        %460 = vmatpush2.msra.mxu0 0.0
        %461 = vmatprep.subr.mxu0 0.0
        %462 = vmatpush2.msra.mxu0 0.0
        %463 = vmatprep.subr.mxu0 0.0
        %464 = vmatpush2.msra.mxu0 0.0
        %465 = vmatprep.subr.mxu0 0.0
        %466 = vmatpush2.msra.mxu0 0.0
        %467 = vmatprep.mubr.f32.mxu0 0.0
        %v468 = vand.u32 %v247, 4294901760
        %v469 = vsub.f32 %v247, %v468
        %470 = vmatmul.mubr.f32.gmra.mxu0 %v469
        %v471 = vpop.f32.mrf.mxu0
        %v472 = vadd.f32 %v398, %v471
        %v473 = vpop.f32.mrf.mxu0
        %474 = vdwg.mxu0
        %475 = vmatprep.subr.mxu0 0.0
        %476 = vmatpush1.msra.mxu0 0.0
        %477 = vmatprep.subr.mxu0 0.0
        %478 = vmatpush1.msra.mxu0 0.0
        %479 = vmatprep.subr.mxu0 0.0
        %480 = vmatpush1.msra.mxu0 0.0
        %481 = vmatprep.subr.mxu0 0.0
        %482 = vmatpush1.msra.mxu0 0.0
        %483 = vmatprep.subr.mxu0 0.0
        %484 = vmatpush1.msra.mxu0 0.0
        %485 = vmatprep.subr.mxu0 0.0
        %486 = vmatpush1.msra.mxu0 0.0
        %487 = vmatprep.subr.mxu0 0.0
        %488 = vmatpush1.msra.mxu0 0.0
        %489 = vmatprep.subr.mxu0 0.0
        %490 = vmatpush1.msra.mxu0 0.0
        %491 = vmatprep.subr.mxu0 0.0
        %492 = vmatpush1.msra.mxu0 0.0
        %493 = vmatprep.subr.mxu0 0.0
        %494 = vmatpush1.msra.mxu0 0.0
        %495 = vmatprep.subr.mxu0 0.0
        %496 = vmatpush1.msra.mxu0 0.0
        %497 = vmatprep.subr.mxu0 0.0
        %498 = vmatpush1.msra.mxu0 0.0
        %499 = vmatprep.subr.mxu0 0.0
        %500 = vmatpush1.msra.mxu0 0.0
        %501 = vmatprep.subr.mxu0 0.0
        %502 = vmatpush1.msra.mxu0 0.0
        %503 = vmatprep.subr.mxu0 0.0
        %504 = vmatpush1.msra.mxu0 0.0
        %505 = vmatprep.subr.mxu0 0.0
        %v506 = vand.u32 %v244, 4294901760
        %507 = vmatpush1.msra.mxu0 %v506
        %508 = vmatprep.subr.mxu0 0.0
        %509 = vmatpush2.msra.mxu0 0.0
        %510 = vmatprep.subr.mxu0 0.0
        %511 = vmatpush2.msra.mxu0 0.0
        %512 = vmatprep.subr.mxu0 0.0
        %513 = vmatpush2.msra.mxu0 0.0
        %514 = vmatprep.subr.mxu0 0.0
        %515 = vmatpush2.msra.mxu0 0.0
        %516 = vmatprep.subr.mxu0 0.0
        %517 = vmatpush2.msra.mxu0 0.0
        %518 = vmatprep.subr.mxu0 0.0
        %519 = vmatpush2.msra.mxu0 0.0
        %520 = vmatprep.subr.mxu0 0.0
        %521 = vmatpush2.msra.mxu0 0.0
        %522 = vmatprep.subr.mxu0 0.0
        %523 = vmatpush2.msra.mxu0 0.0
        %524 = vmatprep.subr.mxu0 0.0
        %525 = vmatpush2.msra.mxu0 0.0
        %526 = vmatprep.subr.mxu0 0.0
        %527 = vmatpush2.msra.mxu0 0.0
        %528 = vmatprep.subr.mxu0 0.0
        %529 = vmatpush2.msra.mxu0 0.0
        %530 = vmatprep.subr.mxu0 0.0
        %531 = vmatpush2.msra.mxu0 0.0
        %532 = vmatprep.subr.mxu0 0.0
        %533 = vmatpush2.msra.mxu0 0.0
        %534 = vmatprep.subr.mxu0 0.0
        %535 = vmatpush2.msra.mxu0 0.0
        %536 = vmatprep.subr.mxu0 0.0
        %537 = vmatpush2.msra.mxu0 0.0
        %538 = vmatprep.subr.mxu0 0.0
        %539 = vmatpush2.msra.mxu0 0.0
        %540 = vmatprep.mubr.f32.mxu0 0.0
        %v541 = vand.u32 %v247, 4294901760
        %v542 = vsub.f32 %v247, %v541
        %v543 = vand.u32 %v542, 4294901760
        %544 = vmatmul.mubr.f32.gmra.mxu0 %v543
        %v545 = vpop.f32.mrf.mxu0
        %v546 = vadd.f32 %v472, %v545
        %v547 = vpop.f32.mrf.mxu0
        %548 = vdwg.mxu0
        %549 = vmatprep.subr.mxu0 0.0
        %550 = vmatpush1.msra.mxu0 0.0
        %551 = vmatprep.subr.mxu0 0.0
        %552 = vmatpush1.msra.mxu0 0.0
        %553 = vmatprep.subr.mxu0 0.0
        %554 = vmatpush1.msra.mxu0 0.0
        %555 = vmatprep.subr.mxu0 0.0
        %556 = vmatpush1.msra.mxu0 0.0
        %557 = vmatprep.subr.mxu0 0.0
        %558 = vmatpush1.msra.mxu0 0.0
        %559 = vmatprep.subr.mxu0 0.0
        %560 = vmatpush1.msra.mxu0 0.0
        %561 = vmatprep.subr.mxu0 0.0
        %562 = vmatpush1.msra.mxu0 0.0
        %563 = vmatprep.subr.mxu0 0.0
        %564 = vmatpush1.msra.mxu0 0.0
        %565 = vmatprep.subr.mxu0 0.0
        %566 = vmatpush1.msra.mxu0 0.0
        %567 = vmatprep.subr.mxu0 0.0
        %568 = vmatpush1.msra.mxu0 0.0
        %569 = vmatprep.subr.mxu0 0.0
        %570 = vmatpush1.msra.mxu0 0.0
        %571 = vmatprep.subr.mxu0 0.0
        %572 = vmatpush1.msra.mxu0 0.0
        %573 = vmatprep.subr.mxu0 0.0
        %574 = vmatpush1.msra.mxu0 0.0
        %575 = vmatprep.subr.mxu0 0.0
        %576 = vmatpush1.msra.mxu0 0.0
        %577 = vmatprep.subr.mxu0 0.0
        %578 = vmatpush1.msra.mxu0 0.0
        %579 = vmatprep.subr.mxu0 0.0
        %v580 = vand.u32 %v244, 4294901760
        %v581 = vsub.f32 %v244, %v580
        %v582 = vand.u32 %v581, 4294901760
        %583 = vmatpush1.msra.mxu0 %v582
        %584 = vmatprep.subr.mxu0 0.0
        %585 = vmatpush2.msra.mxu0 0.0
        %586 = vmatprep.subr.mxu0 0.0
        %587 = vmatpush2.msra.mxu0 0.0
        %588 = vmatprep.subr.mxu0 0.0
        %589 = vmatpush2.msra.mxu0 0.0
        %590 = vmatprep.subr.mxu0 0.0
        %591 = vmatpush2.msra.mxu0 0.0
        %592 = vmatprep.subr.mxu0 0.0
        %593 = vmatpush2.msra.mxu0 0.0
        %594 = vmatprep.subr.mxu0 0.0
        %595 = vmatpush2.msra.mxu0 0.0
        %596 = vmatprep.subr.mxu0 0.0
        %597 = vmatpush2.msra.mxu0 0.0
        %598 = vmatprep.subr.mxu0 0.0
        %599 = vmatpush2.msra.mxu0 0.0
        %600 = vmatprep.subr.mxu0 0.0
        %601 = vmatpush2.msra.mxu0 0.0
        %602 = vmatprep.subr.mxu0 0.0
        %603 = vmatpush2.msra.mxu0 0.0
        %604 = vmatprep.subr.mxu0 0.0
        %605 = vmatpush2.msra.mxu0 0.0
        %606 = vmatprep.subr.mxu0 0.0
        %607 = vmatpush2.msra.mxu0 0.0
        %608 = vmatprep.subr.mxu0 0.0
        %609 = vmatpush2.msra.mxu0 0.0
        %610 = vmatprep.subr.mxu0 0.0
        %611 = vmatpush2.msra.mxu0 0.0
        %612 = vmatprep.subr.mxu0 0.0
        %613 = vmatpush2.msra.mxu0 0.0
        %614 = vmatprep.subr.mxu0 0.0
        %615 = vmatpush2.msra.mxu0 0.0
        %616 = vmatprep.mubr.f32.mxu0 0.0
        %v617 = vand.u32 %v247, 4294901760
        %618 = vmatmul.mubr.f32.gmra.mxu0 %v617
        %v619 = vpop.f32.mrf.mxu0
        %v620 = vadd.f32 %v546, %v619
        %v621 = vpop.f32.mrf.mxu0
        %622 = vdwg.mxu0
        %623 = vmatprep.subr.mxu0 0.0
        %624 = vmatpush1.msra.mxu0 0.0
        %625 = vmatprep.subr.mxu0 0.0
        %626 = vmatpush1.msra.mxu0 0.0
        %627 = vmatprep.subr.mxu0 0.0
        %628 = vmatpush1.msra.mxu0 0.0
        %629 = vmatprep.subr.mxu0 0.0
        %630 = vmatpush1.msra.mxu0 0.0
        %631 = vmatprep.subr.mxu0 0.0
        %632 = vmatpush1.msra.mxu0 0.0
        %633 = vmatprep.subr.mxu0 0.0
        %634 = vmatpush1.msra.mxu0 0.0
        %635 = vmatprep.subr.mxu0 0.0
        %636 = vmatpush1.msra.mxu0 0.0
        %637 = vmatprep.subr.mxu0 0.0
        %638 = vmatpush1.msra.mxu0 0.0
        %639 = vmatprep.subr.mxu0 0.0
        %640 = vmatpush1.msra.mxu0 0.0
        %641 = vmatprep.subr.mxu0 0.0
        %642 = vmatpush1.msra.mxu0 0.0
        %643 = vmatprep.subr.mxu0 0.0
        %644 = vmatpush1.msra.mxu0 0.0
        %645 = vmatprep.subr.mxu0 0.0
        %646 = vmatpush1.msra.mxu0 0.0
        %647 = vmatprep.subr.mxu0 0.0
        %648 = vmatpush1.msra.mxu0 0.0
        %649 = vmatprep.subr.mxu0 0.0
        %650 = vmatpush1.msra.mxu0 0.0
        %651 = vmatprep.subr.mxu0 0.0
        %652 = vmatpush1.msra.mxu0 0.0
        %653 = vmatprep.subr.mxu0 0.0
        %v654 = vand.u32 %v244, 4294901760
        %655 = vmatpush1.msra.mxu0 %v654
        %656 = vmatprep.subr.mxu0 0.0
        %657 = vmatpush2.msra.mxu0 0.0
        %658 = vmatprep.subr.mxu0 0.0
        %659 = vmatpush2.msra.mxu0 0.0
        %660 = vmatprep.subr.mxu0 0.0
        %661 = vmatpush2.msra.mxu0 0.0
        %662 = vmatprep.subr.mxu0 0.0
        %663 = vmatpush2.msra.mxu0 0.0
        %664 = vmatprep.subr.mxu0 0.0
        %665 = vmatpush2.msra.mxu0 0.0
        %666 = vmatprep.subr.mxu0 0.0
        %667 = vmatpush2.msra.mxu0 0.0
        %668 = vmatprep.subr.mxu0 0.0
        %669 = vmatpush2.msra.mxu0 0.0
        %670 = vmatprep.subr.mxu0 0.0
        %671 = vmatpush2.msra.mxu0 0.0
        %672 = vmatprep.subr.mxu0 0.0
        %673 = vmatpush2.msra.mxu0 0.0
        %674 = vmatprep.subr.mxu0 0.0
        %675 = vmatpush2.msra.mxu0 0.0
        %676 = vmatprep.subr.mxu0 0.0
        %677 = vmatpush2.msra.mxu0 0.0
        %678 = vmatprep.subr.mxu0 0.0
        %679 = vmatpush2.msra.mxu0 0.0
        %680 = vmatprep.subr.mxu0 0.0
        %681 = vmatpush2.msra.mxu0 0.0
        %682 = vmatprep.subr.mxu0 0.0
        %683 = vmatpush2.msra.mxu0 0.0
        %684 = vmatprep.subr.mxu0 0.0
        %685 = vmatpush2.msra.mxu0 0.0
        %686 = vmatprep.subr.mxu0 0.0
        %687 = vmatpush2.msra.mxu0 0.0
        %688 = vmatprep.mubr.f32.mxu0 0.0
        %v689 = vand.u32 %v247, 4294901760
        %690 = vmatmul.mubr.f32.gmra.mxu0 %v689
        %v691 = vpop.f32.mrf.mxu0
        %v692 = vadd.f32 %v620, %v691
        %v693 = vpop.f32.mrf.mxu0
        %694 = vdwg.mxu0
        %v695 = vmax.f32 %v692, 0.0
        %s696 = scalar_lea.vmem %s198, 8 [#allocation2]
        %v697 = vld [vmem:[%s696] sm:$0xff]
        %698 = vmatprep.subr.mxu0 0.0
        %699 = vmatpush1.msra.mxu0 0.0
        %700 = vmatprep.subr.mxu0 0.0
        %701 = vmatpush1.msra.mxu0 0.0
        %702 = vmatprep.subr.mxu0 0.0
        %703 = vmatpush1.msra.mxu0 0.0
        %704 = vmatprep.subr.mxu0 0.0
        %705 = vmatpush1.msra.mxu0 0.0
        %706 = vmatprep.subr.mxu0 0.0
        %707 = vmatpush1.msra.mxu0 0.0
        %708 = vmatprep.subr.mxu0 0.0
        %709 = vmatpush1.msra.mxu0 0.0
        %710 = vmatprep.subr.mxu0 0.0
        %711 = vmatpush1.msra.mxu0 0.0
        %712 = vmatprep.subr.mxu0 0.0
        %713 = vmatpush1.msra.mxu0 0.0
        %714 = vmatprep.subr.mxu0 0.0
        %715 = vmatpush1.msra.mxu0 0.0
        %716 = vmatprep.subr.mxu0 0.0
        %717 = vmatpush1.msra.mxu0 0.0
        %718 = vmatprep.subr.mxu0 0.0
        %719 = vmatpush1.msra.mxu0 0.0
        %720 = vmatprep.subr.mxu0 0.0
        %721 = vmatpush1.msra.mxu0 0.0
        %722 = vmatprep.subr.mxu0 0.0
        %723 = vmatpush1.msra.mxu0 0.0
        %724 = vmatprep.subr.mxu0 0.0
        %725 = vmatpush1.msra.mxu0 0.0
        %726 = vmatprep.subr.mxu0 0.0
        %727 = vmatpush1.msra.mxu0 0.0
        %728 = vmatprep.subr.mxu0 0.0
        %v729 = vand.u32 %v697, 4294901760
        %730 = vmatpush1.msra.mxu0 %v729
        %731 = vmatprep.subr.mxu0 0.0
        %732 = vmatpush2.msra.mxu0 0.0
        %733 = vmatprep.subr.mxu0 0.0
        %734 = vmatpush2.msra.mxu0 0.0
        %735 = vmatprep.subr.mxu0 0.0
        %736 = vmatpush2.msra.mxu0 0.0
        %737 = vmatprep.subr.mxu0 0.0
        %738 = vmatpush2.msra.mxu0 0.0
        %739 = vmatprep.subr.mxu0 0.0
        %740 = vmatpush2.msra.mxu0 0.0
        %741 = vmatprep.subr.mxu0 0.0
        %742 = vmatpush2.msra.mxu0 0.0
        %743 = vmatprep.subr.mxu0 0.0
        %744 = vmatpush2.msra.mxu0 0.0
        %745 = vmatprep.subr.mxu0 0.0
        %746 = vmatpush2.msra.mxu0 0.0
        %747 = vmatprep.subr.mxu0 0.0
        %748 = vmatpush2.msra.mxu0 0.0
        %749 = vmatprep.subr.mxu0 0.0
        %750 = vmatpush2.msra.mxu0 0.0
        %751 = vmatprep.subr.mxu0 0.0
        %752 = vmatpush2.msra.mxu0 0.0
        %753 = vmatprep.subr.mxu0 0.0
        %754 = vmatpush2.msra.mxu0 0.0
        %755 = vmatprep.subr.mxu0 0.0
        %756 = vmatpush2.msra.mxu0 0.0
        %757 = vmatprep.subr.mxu0 0.0
        %758 = vmatpush2.msra.mxu0 0.0
        %759 = vmatprep.subr.mxu0 0.0
        %760 = vmatpush2.msra.mxu0 0.0
        %761 = vmatprep.subr.mxu0 0.0
        %762 = vmatpush2.msra.mxu0 0.0
        %763 = vmatprep.mubr.f32.mxu0 0.0
        %v764 = vand.u32 %v247, 4294901760
        %v765 = vsub.f32 %v247, %v764
        %v766 = vand.u32 %v765, 4294901760
        %v767 = vsub.f32 %v765, %v766
        %v768 = vand.u32 %v767, 4294901760
        %769 = vmatmul.mubr.f32.gmra.mxu0 %v768
        %v770 = vpop.f32.mrf.mxu0
        %v771 = vadd.f32 %v242, %v770
        %v772 = vpop.f32.mrf.mxu0
        %773 = vdwg.mxu0
        %774 = vmatprep.subr.mxu0 0.0
        %775 = vmatpush1.msra.mxu0 0.0
        %776 = vmatprep.subr.mxu0 0.0
        %777 = vmatpush1.msra.mxu0 0.0
        %778 = vmatprep.subr.mxu0 0.0
        %779 = vmatpush1.msra.mxu0 0.0
        %780 = vmatprep.subr.mxu0 0.0
        %781 = vmatpush1.msra.mxu0 0.0
        %782 = vmatprep.subr.mxu0 0.0
        %783 = vmatpush1.msra.mxu0 0.0
        %784 = vmatprep.subr.mxu0 0.0
        %785 = vmatpush1.msra.mxu0 0.0
        %786 = vmatprep.subr.mxu0 0.0
        %787 = vmatpush1.msra.mxu0 0.0
        %788 = vmatprep.subr.mxu0 0.0
        %789 = vmatpush1.msra.mxu0 0.0
        %790 = vmatprep.subr.mxu0 0.0
        %791 = vmatpush1.msra.mxu0 0.0
        %792 = vmatprep.subr.mxu0 0.0
        %793 = vmatpush1.msra.mxu0 0.0
        %794 = vmatprep.subr.mxu0 0.0
        %795 = vmatpush1.msra.mxu0 0.0
        %796 = vmatprep.subr.mxu0 0.0
        %797 = vmatpush1.msra.mxu0 0.0
        %798 = vmatprep.subr.mxu0 0.0
        %799 = vmatpush1.msra.mxu0 0.0
        %800 = vmatprep.subr.mxu0 0.0
        %801 = vmatpush1.msra.mxu0 0.0
        %802 = vmatprep.subr.mxu0 0.0
        %803 = vmatpush1.msra.mxu0 0.0
        %804 = vmatprep.subr.mxu0 0.0
        %v805 = vand.u32 %v697, 4294901760
        %v806 = vsub.f32 %v697, %v805
        %v807 = vand.u32 %v806, 4294901760
        %v808 = vsub.f32 %v806, %v807
        %v809 = vand.u32 %v808, 4294901760
        %810 = vmatpush1.msra.mxu0 %v809
        %811 = vmatprep.subr.mxu0 0.0
        %812 = vmatpush2.msra.mxu0 0.0
        %813 = vmatprep.subr.mxu0 0.0
        %814 = vmatpush2.msra.mxu0 0.0
        %815 = vmatprep.subr.mxu0 0.0
        %816 = vmatpush2.msra.mxu0 0.0
        %817 = vmatprep.subr.mxu0 0.0
        %818 = vmatpush2.msra.mxu0 0.0
        %819 = vmatprep.subr.mxu0 0.0
        %820 = vmatpush2.msra.mxu0 0.0
        %821 = vmatprep.subr.mxu0 0.0
        %822 = vmatpush2.msra.mxu0 0.0
        %823 = vmatprep.subr.mxu0 0.0
        %824 = vmatpush2.msra.mxu0 0.0
        %825 = vmatprep.subr.mxu0 0.0
        %826 = vmatpush2.msra.mxu0 0.0
        %827 = vmatprep.subr.mxu0 0.0
        %828 = vmatpush2.msra.mxu0 0.0
        %829 = vmatprep.subr.mxu0 0.0
        %830 = vmatpush2.msra.mxu0 0.0
        %831 = vmatprep.subr.mxu0 0.0
        %832 = vmatpush2.msra.mxu0 0.0
        %833 = vmatprep.subr.mxu0 0.0
        %834 = vmatpush2.msra.mxu0 0.0
        %835 = vmatprep.subr.mxu0 0.0
        %836 = vmatpush2.msra.mxu0 0.0
        %837 = vmatprep.subr.mxu0 0.0
        %838 = vmatpush2.msra.mxu0 0.0
        %839 = vmatprep.subr.mxu0 0.0
        %840 = vmatpush2.msra.mxu0 0.0
        %841 = vmatprep.subr.mxu0 0.0
        %842 = vmatpush2.msra.mxu0 0.0
        %843 = vmatprep.mubr.f32.mxu0 0.0
        %v844 = vand.u32 %v247, 4294901760
        %845 = vmatmul.mubr.f32.gmra.mxu0 %v844
        %v846 = vpop.f32.mrf.mxu0
        %v847 = vadd.f32 %v771, %v846
        %v848 = vpop.f32.mrf.mxu0
        %849 = vdwg.mxu0
        %850 = vmatprep.subr.mxu0 0.0
        %851 = vmatpush1.msra.mxu0 0.0
        %852 = vmatprep.subr.mxu0 0.0
        %853 = vmatpush1.msra.mxu0 0.0
        %854 = vmatprep.subr.mxu0 0.0
        %855 = vmatpush1.msra.mxu0 0.0
        %856 = vmatprep.subr.mxu0 0.0
        %857 = vmatpush1.msra.mxu0 0.0
        %858 = vmatprep.subr.mxu0 0.0
        %859 = vmatpush1.msra.mxu0 0.0
        %860 = vmatprep.subr.mxu0 0.0
        %861 = vmatpush1.msra.mxu0 0.0
        %862 = vmatprep.subr.mxu0 0.0
        %863 = vmatpush1.msra.mxu0 0.0
        %864 = vmatprep.subr.mxu0 0.0
        %865 = vmatpush1.msra.mxu0 0.0
        %866 = vmatprep.subr.mxu0 0.0
        %867 = vmatpush1.msra.mxu0 0.0
        %868 = vmatprep.subr.mxu0 0.0
        %869 = vmatpush1.msra.mxu0 0.0
        %870 = vmatprep.subr.mxu0 0.0
        %871 = vmatpush1.msra.mxu0 0.0
        %872 = vmatprep.subr.mxu0 0.0
        %873 = vmatpush1.msra.mxu0 0.0
        %874 = vmatprep.subr.mxu0 0.0
        %875 = vmatpush1.msra.mxu0 0.0
        %876 = vmatprep.subr.mxu0 0.0
        %877 = vmatpush1.msra.mxu0 0.0
        %878 = vmatprep.subr.mxu0 0.0
        %879 = vmatpush1.msra.mxu0 0.0
        %880 = vmatprep.subr.mxu0 0.0
        %v881 = vand.u32 %v697, 4294901760
        %v882 = vsub.f32 %v697, %v881
        %883 = vmatpush1.msra.mxu0 %v882
        %884 = vmatprep.subr.mxu0 0.0
        %885 = vmatpush2.msra.mxu0 0.0
        %886 = vmatprep.subr.mxu0 0.0
        %887 = vmatpush2.msra.mxu0 0.0
        %888 = vmatprep.subr.mxu0 0.0
        %889 = vmatpush2.msra.mxu0 0.0
        %890 = vmatprep.subr.mxu0 0.0
        %891 = vmatpush2.msra.mxu0 0.0
        %892 = vmatprep.subr.mxu0 0.0
        %893 = vmatpush2.msra.mxu0 0.0
        %894 = vmatprep.subr.mxu0 0.0
        %895 = vmatpush2.msra.mxu0 0.0
        %896 = vmatprep.subr.mxu0 0.0
        %897 = vmatpush2.msra.mxu0 0.0
        %898 = vmatprep.subr.mxu0 0.0
        %899 = vmatpush2.msra.mxu0 0.0
        %900 = vmatprep.subr.mxu0 0.0
        %901 = vmatpush2.msra.mxu0 0.0
        %902 = vmatprep.subr.mxu0 0.0
        %903 = vmatpush2.msra.mxu0 0.0
        %904 = vmatprep.subr.mxu0 0.0
        %905 = vmatpush2.msra.mxu0 0.0
        %906 = vmatprep.subr.mxu0 0.0
        %907 = vmatpush2.msra.mxu0 0.0
        %908 = vmatprep.subr.mxu0 0.0
        %909 = vmatpush2.msra.mxu0 0.0
        %910 = vmatprep.subr.mxu0 0.0
        %911 = vmatpush2.msra.mxu0 0.0
        %912 = vmatprep.subr.mxu0 0.0
        %913 = vmatpush2.msra.mxu0 0.0
        %914 = vmatprep.subr.mxu0 0.0
        %915 = vmatpush2.msra.mxu0 0.0
        %916 = vmatprep.mubr.f32.mxu0 0.0
        %v917 = vand.u32 %v247, 4294901760
        %v918 = vsub.f32 %v247, %v917
        %919 = vmatmul.mubr.f32.gmra.mxu0 %v918
        %v920 = vpop.f32.mrf.mxu0
        %v921 = vadd.f32 %v847, %v920
        %v922 = vpop.f32.mrf.mxu0
        %923 = vdwg.mxu0
        %924 = vmatprep.subr.mxu0 0.0
        %925 = vmatpush1.msra.mxu0 0.0
        %926 = vmatprep.subr.mxu0 0.0
        %927 = vmatpush1.msra.mxu0 0.0
        %928 = vmatprep.subr.mxu0 0.0
        %929 = vmatpush1.msra.mxu0 0.0
        %930 = vmatprep.subr.mxu0 0.0
        %931 = vmatpush1.msra.mxu0 0.0
        %932 = vmatprep.subr.mxu0 0.0
        %933 = vmatpush1.msra.mxu0 0.0
        %934 = vmatprep.subr.mxu0 0.0
        %935 = vmatpush1.msra.mxu0 0.0
        %936 = vmatprep.subr.mxu0 0.0
        %937 = vmatpush1.msra.mxu0 0.0
        %938 = vmatprep.subr.mxu0 0.0
        %939 = vmatpush1.msra.mxu0 0.0
        %940 = vmatprep.subr.mxu0 0.0
        %941 = vmatpush1.msra.mxu0 0.0
        %942 = vmatprep.subr.mxu0 0.0
        %943 = vmatpush1.msra.mxu0 0.0
        %944 = vmatprep.subr.mxu0 0.0
        %945 = vmatpush1.msra.mxu0 0.0
        %946 = vmatprep.subr.mxu0 0.0
        %947 = vmatpush1.msra.mxu0 0.0
        %948 = vmatprep.subr.mxu0 0.0
        %949 = vmatpush1.msra.mxu0 0.0
        %950 = vmatprep.subr.mxu0 0.0
        %951 = vmatpush1.msra.mxu0 0.0
        %952 = vmatprep.subr.mxu0 0.0
        %953 = vmatpush1.msra.mxu0 0.0
        %954 = vmatprep.subr.mxu0 0.0
        %v955 = vand.u32 %v697, 4294901760
        %956 = vmatpush1.msra.mxu0 %v955
        %957 = vmatprep.subr.mxu0 0.0
        %958 = vmatpush2.msra.mxu0 0.0
        %959 = vmatprep.subr.mxu0 0.0
        %960 = vmatpush2.msra.mxu0 0.0
        %961 = vmatprep.subr.mxu0 0.0
        %962 = vmatpush2.msra.mxu0 0.0
        %963 = vmatprep.subr.mxu0 0.0
        %964 = vmatpush2.msra.mxu0 0.0
        %965 = vmatprep.subr.mxu0 0.0
        %966 = vmatpush2.msra.mxu0 0.0
        %967 = vmatprep.subr.mxu0 0.0
        %968 = vmatpush2.msra.mxu0 0.0
        %969 = vmatprep.subr.mxu0 0.0
        %970 = vmatpush2.msra.mxu0 0.0
        %971 = vmatprep.subr.mxu0 0.0
        %972 = vmatpush2.msra.mxu0 0.0
        %973 = vmatprep.subr.mxu0 0.0
        %974 = vmatpush2.msra.mxu0 0.0
        %975 = vmatprep.subr.mxu0 0.0
        %976 = vmatpush2.msra.mxu0 0.0
        %977 = vmatprep.subr.mxu0 0.0
        %978 = vmatpush2.msra.mxu0 0.0
        %979 = vmatprep.subr.mxu0 0.0
        %980 = vmatpush2.msra.mxu0 0.0
        %981 = vmatprep.subr.mxu0 0.0
        %982 = vmatpush2.msra.mxu0 0.0
        %983 = vmatprep.subr.mxu0 0.0
        %984 = vmatpush2.msra.mxu0 0.0
        %985 = vmatprep.subr.mxu0 0.0
        %986 = vmatpush2.msra.mxu0 0.0
        %987 = vmatprep.subr.mxu0 0.0
        %988 = vmatpush2.msra.mxu0 0.0
        %989 = vmatprep.mubr.f32.mxu0 0.0
        %v990 = vand.u32 %v247, 4294901760
        %v991 = vsub.f32 %v247, %v990
        %v992 = vand.u32 %v991, 4294901760
        %993 = vmatmul.mubr.f32.gmra.mxu0 %v992
        %v994 = vpop.f32.mrf.mxu0
        %v995 = vadd.f32 %v921, %v994
        %v996 = vpop.f32.mrf.mxu0
        %997 = vdwg.mxu0
        %998 = vmatprep.subr.mxu0 0.0
        %999 = vmatpush1.msra.mxu0 0.0
        %1000 = vmatprep.subr.mxu0 0.0
        %1001 = vmatpush1.msra.mxu0 0.0
        %1002 = vmatprep.subr.mxu0 0.0
        %1003 = vmatpush1.msra.mxu0 0.0
        %1004 = vmatprep.subr.mxu0 0.0
        %1005 = vmatpush1.msra.mxu0 0.0
        %1006 = vmatprep.subr.mxu0 0.0
        %1007 = vmatpush1.msra.mxu0 0.0
        %1008 = vmatprep.subr.mxu0 0.0
        %1009 = vmatpush1.msra.mxu0 0.0
        %1010 = vmatprep.subr.mxu0 0.0
        %1011 = vmatpush1.msra.mxu0 0.0
        %1012 = vmatprep.subr.mxu0 0.0
        %1013 = vmatpush1.msra.mxu0 0.0
        %1014 = vmatprep.subr.mxu0 0.0
        %1015 = vmatpush1.msra.mxu0 0.0
        %1016 = vmatprep.subr.mxu0 0.0
        %1017 = vmatpush1.msra.mxu0 0.0
        %1018 = vmatprep.subr.mxu0 0.0
        %1019 = vmatpush1.msra.mxu0 0.0
        %1020 = vmatprep.subr.mxu0 0.0
        %1021 = vmatpush1.msra.mxu0 0.0
        %1022 = vmatprep.subr.mxu0 0.0
        %1023 = vmatpush1.msra.mxu0 0.0
        %1024 = vmatprep.subr.mxu0 0.0
        %1025 = vmatpush1.msra.mxu0 0.0
        %1026 = vmatprep.subr.mxu0 0.0
        %1027 = vmatpush1.msra.mxu0 0.0
        %1028 = vmatprep.subr.mxu0 0.0
        %v1029 = vand.u32 %v697, 4294901760
        %v1030 = vsub.f32 %v697, %v1029
        %v1031 = vand.u32 %v1030, 4294901760
        %1032 = vmatpush1.msra.mxu0 %v1031
        %1033 = vmatprep.subr.mxu0 0.0
        %1034 = vmatpush2.msra.mxu0 0.0
        %1035 = vmatprep.subr.mxu0 0.0
        %1036 = vmatpush2.msra.mxu0 0.0
        %1037 = vmatprep.subr.mxu0 0.0
        %1038 = vmatpush2.msra.mxu0 0.0
        %1039 = vmatprep.subr.mxu0 0.0
        %1040 = vmatpush2.msra.mxu0 0.0
        %1041 = vmatprep.subr.mxu0 0.0
        %1042 = vmatpush2.msra.mxu0 0.0
        %1043 = vmatprep.subr.mxu0 0.0
        %1044 = vmatpush2.msra.mxu0 0.0
        %1045 = vmatprep.subr.mxu0 0.0
        %1046 = vmatpush2.msra.mxu0 0.0
        %1047 = vmatprep.subr.mxu0 0.0
        %1048 = vmatpush2.msra.mxu0 0.0
        %1049 = vmatprep.subr.mxu0 0.0
        %1050 = vmatpush2.msra.mxu0 0.0
        %1051 = vmatprep.subr.mxu0 0.0
        %1052 = vmatpush2.msra.mxu0 0.0
        %1053 = vmatprep.subr.mxu0 0.0
        %1054 = vmatpush2.msra.mxu0 0.0
        %1055 = vmatprep.subr.mxu0 0.0
        %1056 = vmatpush2.msra.mxu0 0.0
        %1057 = vmatprep.subr.mxu0 0.0
        %1058 = vmatpush2.msra.mxu0 0.0
        %1059 = vmatprep.subr.mxu0 0.0
        %1060 = vmatpush2.msra.mxu0 0.0
        %1061 = vmatprep.subr.mxu0 0.0
        %1062 = vmatpush2.msra.mxu0 0.0
        %1063 = vmatprep.subr.mxu0 0.0
        %1064 = vmatpush2.msra.mxu0 0.0
        %1065 = vmatprep.mubr.f32.mxu0 0.0
        %v1066 = vand.u32 %v247, 4294901760
        %1067 = vmatmul.mubr.f32.gmra.mxu0 %v1066
        %v1068 = vpop.f32.mrf.mxu0
        %v1069 = vadd.f32 %v995, %v1068
        %v1070 = vpop.f32.mrf.mxu0
        %1071 = vdwg.mxu0
        %1072 = vmatprep.subr.mxu0 0.0
        %1073 = vmatpush1.msra.mxu0 0.0
        %1074 = vmatprep.subr.mxu0 0.0
        %1075 = vmatpush1.msra.mxu0 0.0
        %1076 = vmatprep.subr.mxu0 0.0
        %1077 = vmatpush1.msra.mxu0 0.0
        %1078 = vmatprep.subr.mxu0 0.0
        %1079 = vmatpush1.msra.mxu0 0.0
        %1080 = vmatprep.subr.mxu0 0.0
        %1081 = vmatpush1.msra.mxu0 0.0
        %1082 = vmatprep.subr.mxu0 0.0
        %1083 = vmatpush1.msra.mxu0 0.0
        %1084 = vmatprep.subr.mxu0 0.0
        %1085 = vmatpush1.msra.mxu0 0.0
        %1086 = vmatprep.subr.mxu0 0.0
        %1087 = vmatpush1.msra.mxu0 0.0
        %1088 = vmatprep.subr.mxu0 0.0
        %1089 = vmatpush1.msra.mxu0 0.0
        %1090 = vmatprep.subr.mxu0 0.0
        %1091 = vmatpush1.msra.mxu0 0.0
        %1092 = vmatprep.subr.mxu0 0.0
        %1093 = vmatpush1.msra.mxu0 0.0
        %1094 = vmatprep.subr.mxu0 0.0
        %1095 = vmatpush1.msra.mxu0 0.0
        %1096 = vmatprep.subr.mxu0 0.0
        %1097 = vmatpush1.msra.mxu0 0.0
        %1098 = vmatprep.subr.mxu0 0.0
        %1099 = vmatpush1.msra.mxu0 0.0
        %1100 = vmatprep.subr.mxu0 0.0
        %1101 = vmatpush1.msra.mxu0 0.0
        %1102 = vmatprep.subr.mxu0 0.0
        %v1103 = vand.u32 %v697, 4294901760
        %1104 = vmatpush1.msra.mxu0 %v1103
        %1105 = vmatprep.subr.mxu0 0.0
        %1106 = vmatpush2.msra.mxu0 0.0
        %1107 = vmatprep.subr.mxu0 0.0
        %1108 = vmatpush2.msra.mxu0 0.0
        %1109 = vmatprep.subr.mxu0 0.0
        %1110 = vmatpush2.msra.mxu0 0.0
        %1111 = vmatprep.subr.mxu0 0.0
        %1112 = vmatpush2.msra.mxu0 0.0
        %1113 = vmatprep.subr.mxu0 0.0
        %1114 = vmatpush2.msra.mxu0 0.0
        %1115 = vmatprep.subr.mxu0 0.0
        %1116 = vmatpush2.msra.mxu0 0.0
        %1117 = vmatprep.subr.mxu0 0.0
        %1118 = vmatpush2.msra.mxu0 0.0
        %1119 = vmatprep.subr.mxu0 0.0
        %1120 = vmatpush2.msra.mxu0 0.0
        %1121 = vmatprep.subr.mxu0 0.0
        %1122 = vmatpush2.msra.mxu0 0.0
        %1123 = vmatprep.subr.mxu0 0.0
        %1124 = vmatpush2.msra.mxu0 0.0
        %1125 = vmatprep.subr.mxu0 0.0
        %1126 = vmatpush2.msra.mxu0 0.0
        %1127 = vmatprep.subr.mxu0 0.0
        %1128 = vmatpush2.msra.mxu0 0.0
        %1129 = vmatprep.subr.mxu0 0.0
        %1130 = vmatpush2.msra.mxu0 0.0
        %1131 = vmatprep.subr.mxu0 0.0
        %1132 = vmatpush2.msra.mxu0 0.0
        %1133 = vmatprep.subr.mxu0 0.0
        %1134 = vmatpush2.msra.mxu0 0.0
        %1135 = vmatprep.subr.mxu0 0.0
        %1136 = vmatpush2.msra.mxu0 0.0
        %1137 = vmatprep.mubr.f32.mxu0 0.0
        %v1138 = vand.u32 %v247, 4294901760
        %1139 = vmatmul.mubr.f32.gmra.mxu0 %v1138
        %v1140 = vpop.f32.mrf.mxu0
        %v1141 = vadd.f32 %v1069, %v1140
        %v1142 = vpop.f32.mrf.mxu0
        %1143 = vdwg.mxu0
        %v1144 = vmax.f32 %v1141, 0.0
        %v1145 = vadd.f32 %v695, %v1144
        %s1146 = scalar_lea.vmem %s198, 16 [#allocation2]
        %v1147 = vld [vmem:[%s1146] sm:$0xff]
        %1148 = vmatprep.subr.mxu0 0.0
        %1149 = vmatpush1.msra.mxu0 0.0
        %1150 = vmatprep.subr.mxu0 0.0
        %1151 = vmatpush1.msra.mxu0 0.0
        %1152 = vmatprep.subr.mxu0 0.0
        %1153 = vmatpush1.msra.mxu0 0.0
        %1154 = vmatprep.subr.mxu0 0.0
        %1155 = vmatpush1.msra.mxu0 0.0
        %1156 = vmatprep.subr.mxu0 0.0
        %1157 = vmatpush1.msra.mxu0 0.0
        %1158 = vmatprep.subr.mxu0 0.0
        %1159 = vmatpush1.msra.mxu0 0.0
        %1160 = vmatprep.subr.mxu0 0.0
        %1161 = vmatpush1.msra.mxu0 0.0
        %1162 = vmatprep.subr.mxu0 0.0
        %1163 = vmatpush1.msra.mxu0 0.0
        %1164 = vmatprep.subr.mxu0 0.0
        %1165 = vmatpush1.msra.mxu0 0.0
        %1166 = vmatprep.subr.mxu0 0.0
        %1167 = vmatpush1.msra.mxu0 0.0
        %1168 = vmatprep.subr.mxu0 0.0
        %1169 = vmatpush1.msra.mxu0 0.0
        %1170 = vmatprep.subr.mxu0 0.0
        %1171 = vmatpush1.msra.mxu0 0.0
        %1172 = vmatprep.subr.mxu0 0.0
        %1173 = vmatpush1.msra.mxu0 0.0
        %1174 = vmatprep.subr.mxu0 0.0
        %1175 = vmatpush1.msra.mxu0 0.0
        %1176 = vmatprep.subr.mxu0 0.0
        %1177 = vmatpush1.msra.mxu0 0.0
        %1178 = vmatprep.subr.mxu0 0.0
        %v1179 = vand.u32 %v1147, 4294901760
        %1180 = vmatpush1.msra.mxu0 %v1179
        %1181 = vmatprep.subr.mxu0 0.0
        %1182 = vmatpush2.msra.mxu0 0.0
        %1183 = vmatprep.subr.mxu0 0.0
        %1184 = vmatpush2.msra.mxu0 0.0
        %1185 = vmatprep.subr.mxu0 0.0
        %1186 = vmatpush2.msra.mxu0 0.0
        %1187 = vmatprep.subr.mxu0 0.0
        %1188 = vmatpush2.msra.mxu0 0.0
        %1189 = vmatprep.subr.mxu0 0.0
        %1190 = vmatpush2.msra.mxu0 0.0
        %1191 = vmatprep.subr.mxu0 0.0
        %1192 = vmatpush2.msra.mxu0 0.0
        %1193 = vmatprep.subr.mxu0 0.0
        %1194 = vmatpush2.msra.mxu0 0.0
        %1195 = vmatprep.subr.mxu0 0.0
        %1196 = vmatpush2.msra.mxu0 0.0
        %1197 = vmatprep.subr.mxu0 0.0
        %1198 = vmatpush2.msra.mxu0 0.0
        %1199 = vmatprep.subr.mxu0 0.0
        %1200 = vmatpush2.msra.mxu0 0.0
        %1201 = vmatprep.subr.mxu0 0.0
        %1202 = vmatpush2.msra.mxu0 0.0
        %1203 = vmatprep.subr.mxu0 0.0
        %1204 = vmatpush2.msra.mxu0 0.0
        %1205 = vmatprep.subr.mxu0 0.0
        %1206 = vmatpush2.msra.mxu0 0.0
        %1207 = vmatprep.subr.mxu0 0.0
        %1208 = vmatpush2.msra.mxu0 0.0
        %1209 = vmatprep.subr.mxu0 0.0
        %1210 = vmatpush2.msra.mxu0 0.0
        %1211 = vmatprep.subr.mxu0 0.0
        %1212 = vmatpush2.msra.mxu0 0.0
        %1213 = vmatprep.mubr.f32.mxu0 0.0
        %v1214 = vand.u32 %v247, 4294901760
        %v1215 = vsub.f32 %v247, %v1214
        %v1216 = vand.u32 %v1215, 4294901760
        %v1217 = vsub.f32 %v1215, %v1216
        %v1218 = vand.u32 %v1217, 4294901760
        %1219 = vmatmul.mubr.f32.gmra.mxu0 %v1218
        %v1220 = vpop.f32.mrf.mxu0
        %v1221 = vadd.f32 %v242, %v1220
        %v1222 = vpop.f32.mrf.mxu0
        %1223 = vdwg.mxu0
        %1224 = vmatprep.subr.mxu0 0.0
        %1225 = vmatpush1.msra.mxu0 0.0
        %1226 = vmatprep.subr.mxu0 0.0
        %1227 = vmatpush1.msra.mxu0 0.0
        %1228 = vmatprep.subr.mxu0 0.0
        %1229 = vmatpush1.msra.mxu0 0.0
        %1230 = vmatprep.subr.mxu0 0.0
        %1231 = vmatpush1.msra.mxu0 0.0
        %1232 = vmatprep.subr.mxu0 0.0
        %1233 = vmatpush1.msra.mxu0 0.0
        %1234 = vmatprep.subr.mxu0 0.0
        %1235 = vmatpush1.msra.mxu0 0.0
        %1236 = vmatprep.subr.mxu0 0.0
        %1237 = vmatpush1.msra.mxu0 0.0
        %1238 = vmatprep.subr.mxu0 0.0
        %1239 = vmatpush1.msra.mxu0 0.0
        %1240 = vmatprep.subr.mxu0 0.0
        %1241 = vmatpush1.msra.mxu0 0.0
        %1242 = vmatprep.subr.mxu0 0.0
        %1243 = vmatpush1.msra.mxu0 0.0
        %1244 = vmatprep.subr.mxu0 0.0
        %1245 = vmatpush1.msra.mxu0 0.0
        %1246 = vmatprep.subr.mxu0 0.0
        %1247 = vmatpush1.msra.mxu0 0.0
        %1248 = vmatprep.subr.mxu0 0.0
        %1249 = vmatpush1.msra.mxu0 0.0
        %1250 = vmatprep.subr.mxu0 0.0
        %1251 = vmatpush1.msra.mxu0 0.0
        %1252 = vmatprep.subr.mxu0 0.0
        %1253 = vmatpush1.msra.mxu0 0.0
        %1254 = vmatprep.subr.mxu0 0.0
        %v1255 = vand.u32 %v1147, 4294901760
        %v1256 = vsub.f32 %v1147, %v1255
        %v1257 = vand.u32 %v1256, 4294901760
        %v1258 = vsub.f32 %v1256, %v1257
        %v1259 = vand.u32 %v1258, 4294901760
        %1260 = vmatpush1.msra.mxu0 %v1259
        %1261 = vmatprep.subr.mxu0 0.0
        %1262 = vmatpush2.msra.mxu0 0.0
        %1263 = vmatprep.subr.mxu0 0.0
        %1264 = vmatpush2.msra.mxu0 0.0
        %1265 = vmatprep.subr.mxu0 0.0
        %1266 = vmatpush2.msra.mxu0 0.0
        %1267 = vmatprep.subr.mxu0 0.0
        %1268 = vmatpush2.msra.mxu0 0.0
        %1269 = vmatprep.subr.mxu0 0.0
        %1270 = vmatpush2.msra.mxu0 0.0
        %1271 = vmatprep.subr.mxu0 0.0
        %1272 = vmatpush2.msra.mxu0 0.0
        %1273 = vmatprep.subr.mxu0 0.0
        %1274 = vmatpush2.msra.mxu0 0.0
        %1275 = vmatprep.subr.mxu0 0.0
        %1276 = vmatpush2.msra.mxu0 0.0
        %1277 = vmatprep.subr.mxu0 0.0
        %1278 = vmatpush2.msra.mxu0 0.0
        %1279 = vmatprep.subr.mxu0 0.0
        %1280 = vmatpush2.msra.mxu0 0.0
        %1281 = vmatprep.subr.mxu0 0.0
        %1282 = vmatpush2.msra.mxu0 0.0
        %1283 = vmatprep.subr.mxu0 0.0
        %1284 = vmatpush2.msra.mxu0 0.0
        %1285 = vmatprep.subr.mxu0 0.0
        %1286 = vmatpush2.msra.mxu0 0.0
        %1287 = vmatprep.subr.mxu0 0.0
        %1288 = vmatpush2.msra.mxu0 0.0
        %1289 = vmatprep.subr.mxu0 0.0
        %1290 = vmatpush2.msra.mxu0 0.0
        %1291 = vmatprep.subr.mxu0 0.0
        %1292 = vmatpush2.msra.mxu0 0.0
        %1293 = vmatprep.mubr.f32.mxu0 0.0
        %v1294 = vand.u32 %v247, 4294901760
        %1295 = vmatmul.mubr.f32.gmra.mxu0 %v1294
        %v1296 = vpop.f32.mrf.mxu0
        %v1297 = vadd.f32 %v1221, %v1296
        %v1298 = vpop.f32.mrf.mxu0
        %1299 = vdwg.mxu0
        %1300 = vmatprep.subr.mxu0 0.0
        %1301 = vmatpush1.msra.mxu0 0.0
        %1302 = vmatprep.subr.mxu0 0.0
        %1303 = vmatpush1.msra.mxu0 0.0
        %1304 = vmatprep.subr.mxu0 0.0
        %1305 = vmatpush1.msra.mxu0 0.0
        %1306 = vmatprep.subr.mxu0 0.0
        %1307 = vmatpush1.msra.mxu0 0.0
        %1308 = vmatprep.subr.mxu0 0.0
        %1309 = vmatpush1.msra.mxu0 0.0
        %1310 = vmatprep.subr.mxu0 0.0
        %1311 = vmatpush1.msra.mxu0 0.0
        %1312 = vmatprep.subr.mxu0 0.0
        %1313 = vmatpush1.msra.mxu0 0.0
        %1314 = vmatprep.subr.mxu0 0.0
        %1315 = vmatpush1.msra.mxu0 0.0
        %1316 = vmatprep.subr.mxu0 0.0
        %1317 = vmatpush1.msra.mxu0 0.0
        %1318 = vmatprep.subr.mxu0 0.0
        %1319 = vmatpush1.msra.mxu0 0.0
        %1320 = vmatprep.subr.mxu0 0.0
        %1321 = vmatpush1.msra.mxu0 0.0
        %1322 = vmatprep.subr.mxu0 0.0
        %1323 = vmatpush1.msra.mxu0 0.0
        %1324 = vmatprep.subr.mxu0 0.0
        %1325 = vmatpush1.msra.mxu0 0.0
        %1326 = vmatprep.subr.mxu0 0.0
        %1327 = vmatpush1.msra.mxu0 0.0
        %1328 = vmatprep.subr.mxu0 0.0
        %1329 = vmatpush1.msra.mxu0 0.0
        %1330 = vmatprep.subr.mxu0 0.0
        %v1331 = vand.u32 %v1147, 4294901760
        %v1332 = vsub.f32 %v1147, %v1331
        %1333 = vmatpush1.msra.mxu0 %v1332
        %1334 = vmatprep.subr.mxu0 0.0
        %1335 = vmatpush2.msra.mxu0 0.0
        %1336 = vmatprep.subr.mxu0 0.0
        %1337 = vmatpush2.msra.mxu0 0.0
        %1338 = vmatprep.subr.mxu0 0.0
        %1339 = vmatpush2.msra.mxu0 0.0
        %1340 = vmatprep.subr.mxu0 0.0
        %1341 = vmatpush2.msra.mxu0 0.0
        %1342 = vmatprep.subr.mxu0 0.0
        %1343 = vmatpush2.msra.mxu0 0.0
        %1344 = vmatprep.subr.mxu0 0.0
        %1345 = vmatpush2.msra.mxu0 0.0
        %1346 = vmatprep.subr.mxu0 0.0
        %1347 = vmatpush2.msra.mxu0 0.0
        %1348 = vmatprep.subr.mxu0 0.0
        %1349 = vmatpush2.msra.mxu0 0.0
        %1350 = vmatprep.subr.mxu0 0.0
        %1351 = vmatpush2.msra.mxu0 0.0
        %1352 = vmatprep.subr.mxu0 0.0
        %1353 = vmatpush2.msra.mxu0 0.0
        %1354 = vmatprep.subr.mxu0 0.0
        %1355 = vmatpush2.msra.mxu0 0.0
        %1356 = vmatprep.subr.mxu0 0.0
        %1357 = vmatpush2.msra.mxu0 0.0
        %1358 = vmatprep.subr.mxu0 0.0
        %1359 = vmatpush2.msra.mxu0 0.0
        %1360 = vmatprep.subr.mxu0 0.0
        %1361 = vmatpush2.msra.mxu0 0.0
        %1362 = vmatprep.subr.mxu0 0.0
        %1363 = vmatpush2.msra.mxu0 0.0
        %1364 = vmatprep.subr.mxu0 0.0
        %1365 = vmatpush2.msra.mxu0 0.0
        %1366 = vmatprep.mubr.f32.mxu0 0.0
        %v1367 = vand.u32 %v247, 4294901760
        %v1368 = vsub.f32 %v247, %v1367
        %1369 = vmatmul.mubr.f32.gmra.mxu0 %v1368
        %v1370 = vpop.f32.mrf.mxu0
        %v1371 = vadd.f32 %v1297, %v1370
        %v1372 = vpop.f32.mrf.mxu0
        %1373 = vdwg.mxu0
        %1374 = vmatprep.subr.mxu0 0.0
        %1375 = vmatpush1.msra.mxu0 0.0
        %1376 = vmatprep.subr.mxu0 0.0
        %1377 = vmatpush1.msra.mxu0 0.0
        %1378 = vmatprep.subr.mxu0 0.0
        %1379 = vmatpush1.msra.mxu0 0.0
        %1380 = vmatprep.subr.mxu0 0.0
        %1381 = vmatpush1.msra.mxu0 0.0
        %1382 = vmatprep.subr.mxu0 0.0
        %1383 = vmatpush1.msra.mxu0 0.0
        %1384 = vmatprep.subr.mxu0 0.0
        %1385 = vmatpush1.msra.mxu0 0.0
        %1386 = vmatprep.subr.mxu0 0.0
        %1387 = vmatpush1.msra.mxu0 0.0
        %1388 = vmatprep.subr.mxu0 0.0
        %1389 = vmatpush1.msra.mxu0 0.0
        %1390 = vmatprep.subr.mxu0 0.0
        %1391 = vmatpush1.msra.mxu0 0.0
        %1392 = vmatprep.subr.mxu0 0.0
        %1393 = vmatpush1.msra.mxu0 0.0
        %1394 = vmatprep.subr.mxu0 0.0
        %1395 = vmatpush1.msra.mxu0 0.0
        %1396 = vmatprep.subr.mxu0 0.0
        %1397 = vmatpush1.msra.mxu0 0.0
        %1398 = vmatprep.subr.mxu0 0.0
        %1399 = vmatpush1.msra.mxu0 0.0
        %1400 = vmatprep.subr.mxu0 0.0
        %1401 = vmatpush1.msra.mxu0 0.0
        %1402 = vmatprep.subr.mxu0 0.0
        %1403 = vmatpush1.msra.mxu0 0.0
        %1404 = vmatprep.subr.mxu0 0.0
        %v1405 = vand.u32 %v1147, 4294901760
        %1406 = vmatpush1.msra.mxu0 %v1405
        %1407 = vmatprep.subr.mxu0 0.0
        %1408 = vmatpush2.msra.mxu0 0.0
        %1409 = vmatprep.subr.mxu0 0.0
        %1410 = vmatpush2.msra.mxu0 0.0
        %1411 = vmatprep.subr.mxu0 0.0
        %1412 = vmatpush2.msra.mxu0 0.0
        %1413 = vmatprep.subr.mxu0 0.0
        %1414 = vmatpush2.msra.mxu0 0.0
        %1415 = vmatprep.subr.mxu0 0.0
        %1416 = vmatpush2.msra.mxu0 0.0
        %1417 = vmatprep.subr.mxu0 0.0
        %1418 = vmatpush2.msra.mxu0 0.0
        %1419 = vmatprep.subr.mxu0 0.0
        %1420 = vmatpush2.msra.mxu0 0.0
        %1421 = vmatprep.subr.mxu0 0.0
        %1422 = vmatpush2.msra.mxu0 0.0
        %1423 = vmatprep.subr.mxu0 0.0
        %1424 = vmatpush2.msra.mxu0 0.0
        %1425 = vmatprep.subr.mxu0 0.0
        %1426 = vmatpush2.msra.mxu0 0.0
        %1427 = vmatprep.subr.mxu0 0.0
        %1428 = vmatpush2.msra.mxu0 0.0
        %1429 = vmatprep.subr.mxu0 0.0
        %1430 = vmatpush2.msra.mxu0 0.0
        %1431 = vmatprep.subr.mxu0 0.0
        %1432 = vmatpush2.msra.mxu0 0.0
        %1433 = vmatprep.subr.mxu0 0.0
        %1434 = vmatpush2.msra.mxu0 0.0
        %1435 = vmatprep.subr.mxu0 0.0
        %1436 = vmatpush2.msra.mxu0 0.0
        %1437 = vmatprep.subr.mxu0 0.0
        %1438 = vmatpush2.msra.mxu0 0.0
        %1439 = vmatprep.mubr.f32.mxu0 0.0
        %v1440 = vand.u32 %v247, 4294901760
        %v1441 = vsub.f32 %v247, %v1440
        %v1442 = vand.u32 %v1441, 4294901760
        %1443 = vmatmul.mubr.f32.gmra.mxu0 %v1442
        %v1444 = vpop.f32.mrf.mxu0
        %v1445 = vadd.f32 %v1371, %v1444
        %v1446 = vpop.f32.mrf.mxu0
        %1447 = vdwg.mxu0
        %1448 = vmatprep.subr.mxu0 0.0
        %1449 = vmatpush1.msra.mxu0 0.0
        %1450 = vmatprep.subr.mxu0 0.0
        %1451 = vmatpush1.msra.mxu0 0.0
        %1452 = vmatprep.subr.mxu0 0.0
        %1453 = vmatpush1.msra.mxu0 0.0
        %1454 = vmatprep.subr.mxu0 0.0
        %1455 = vmatpush1.msra.mxu0 0.0
        %1456 = vmatprep.subr.mxu0 0.0
        %1457 = vmatpush1.msra.mxu0 0.0
        %1458 = vmatprep.subr.mxu0 0.0
        %1459 = vmatpush1.msra.mxu0 0.0
        %1460 = vmatprep.subr.mxu0 0.0
        %1461 = vmatpush1.msra.mxu0 0.0
        %1462 = vmatprep.subr.mxu0 0.0
        %1463 = vmatpush1.msra.mxu0 0.0
        %1464 = vmatprep.subr.mxu0 0.0
        %1465 = vmatpush1.msra.mxu0 0.0
        %1466 = vmatprep.subr.mxu0 0.0
        %1467 = vmatpush1.msra.mxu0 0.0
        %1468 = vmatprep.subr.mxu0 0.0
        %1469 = vmatpush1.msra.mxu0 0.0
        %1470 = vmatprep.subr.mxu0 0.0
        %1471 = vmatpush1.msra.mxu0 0.0
        %1472 = vmatprep.subr.mxu0 0.0
        %1473 = vmatpush1.msra.mxu0 0.0
        %1474 = vmatprep.subr.mxu0 0.0
        %1475 = vmatpush1.msra.mxu0 0.0
        %1476 = vmatprep.subr.mxu0 0.0
        %1477 = vmatpush1.msra.mxu0 0.0
        %1478 = vmatprep.subr.mxu0 0.0
        %v1479 = vand.u32 %v1147, 4294901760
        %v1480 = vsub.f32 %v1147, %v1479
        %v1481 = vand.u32 %v1480, 4294901760
        %1482 = vmatpush1.msra.mxu0 %v1481
        %1483 = vmatprep.subr.mxu0 0.0
        %1484 = vmatpush2.msra.mxu0 0.0
        %1485 = vmatprep.subr.mxu0 0.0
        %1486 = vmatpush2.msra.mxu0 0.0
        %1487 = vmatprep.subr.mxu0 0.0
        %1488 = vmatpush2.msra.mxu0 0.0
        %1489 = vmatprep.subr.mxu0 0.0
        %1490 = vmatpush2.msra.mxu0 0.0
        %1491 = vmatprep.subr.mxu0 0.0
        %1492 = vmatpush2.msra.mxu0 0.0
        %1493 = vmatprep.subr.mxu0 0.0
        %1494 = vmatpush2.msra.mxu0 0.0
        %1495 = vmatprep.subr.mxu0 0.0
        %1496 = vmatpush2.msra.mxu0 0.0
        %1497 = vmatprep.subr.mxu0 0.0
        %1498 = vmatpush2.msra.mxu0 0.0
        %1499 = vmatprep.subr.mxu0 0.0
        %1500 = vmatpush2.msra.mxu0 0.0
        %1501 = vmatprep.subr.mxu0 0.0
        %1502 = vmatpush2.msra.mxu0 0.0
        %1503 = vmatprep.subr.mxu0 0.0
        %1504 = vmatpush2.msra.mxu0 0.0
        %1505 = vmatprep.subr.mxu0 0.0
        %1506 = vmatpush2.msra.mxu0 0.0
        %1507 = vmatprep.subr.mxu0 0.0
        %1508 = vmatpush2.msra.mxu0 0.0
        %1509 = vmatprep.subr.mxu0 0.0
        %1510 = vmatpush2.msra.mxu0 0.0
        %1511 = vmatprep.subr.mxu0 0.0
        %1512 = vmatpush2.msra.mxu0 0.0
        %1513 = vmatprep.subr.mxu0 0.0
        %1514 = vmatpush2.msra.mxu0 0.0
        %1515 = vmatprep.mubr.f32.mxu0 0.0
        %v1516 = vand.u32 %v247, 4294901760
        %1517 = vmatmul.mubr.f32.gmra.mxu0 %v1516
        %v1518 = vpop.f32.mrf.mxu0
        %v1519 = vadd.f32 %v1445, %v1518
        %v1520 = vpop.f32.mrf.mxu0
        %1521 = vdwg.mxu0
        %1522 = vmatprep.subr.mxu0 0.0
        %1523 = vmatpush1.msra.mxu0 0.0
        %1524 = vmatprep.subr.mxu0 0.0
        %1525 = vmatpush1.msra.mxu0 0.0
        %1526 = vmatprep.subr.mxu0 0.0
        %1527 = vmatpush1.msra.mxu0 0.0
        %1528 = vmatprep.subr.mxu0 0.0
        %1529 = vmatpush1.msra.mxu0 0.0
        %1530 = vmatprep.subr.mxu0 0.0
        %1531 = vmatpush1.msra.mxu0 0.0
        %1532 = vmatprep.subr.mxu0 0.0
        %1533 = vmatpush1.msra.mxu0 0.0
        %1534 = vmatprep.subr.mxu0 0.0
        %1535 = vmatpush1.msra.mxu0 0.0
        %1536 = vmatprep.subr.mxu0 0.0
        %1537 = vmatpush1.msra.mxu0 0.0
        %1538 = vmatprep.subr.mxu0 0.0
        %1539 = vmatpush1.msra.mxu0 0.0
        %1540 = vmatprep.subr.mxu0 0.0
        %1541 = vmatpush1.msra.mxu0 0.0
        %1542 = vmatprep.subr.mxu0 0.0
        %1543 = vmatpush1.msra.mxu0 0.0
        %1544 = vmatprep.subr.mxu0 0.0
        %1545 = vmatpush1.msra.mxu0 0.0
        %1546 = vmatprep.subr.mxu0 0.0
        %1547 = vmatpush1.msra.mxu0 0.0
        %1548 = vmatprep.subr.mxu0 0.0
        %1549 = vmatpush1.msra.mxu0 0.0
        %1550 = vmatprep.subr.mxu0 0.0
        %1551 = vmatpush1.msra.mxu0 0.0
        %1552 = vmatprep.subr.mxu0 0.0
        %v1553 = vand.u32 %v1147, 4294901760
        %1554 = vmatpush1.msra.mxu0 %v1553
        %1555 = vmatprep.subr.mxu0 0.0
        %1556 = vmatpush2.msra.mxu0 0.0
        %1557 = vmatprep.subr.mxu0 0.0
        %1558 = vmatpush2.msra.mxu0 0.0
        %1559 = vmatprep.subr.mxu0 0.0
        %1560 = vmatpush2.msra.mxu0 0.0
        %1561 = vmatprep.subr.mxu0 0.0
        %1562 = vmatpush2.msra.mxu0 0.0
        %1563 = vmatprep.subr.mxu0 0.0
        %1564 = vmatpush2.msra.mxu0 0.0
        %1565 = vmatprep.subr.mxu0 0.0
        %1566 = vmatpush2.msra.mxu0 0.0
        %1567 = vmatprep.subr.mxu0 0.0
        %1568 = vmatpush2.msra.mxu0 0.0
        %1569 = vmatprep.subr.mxu0 0.0
        %1570 = vmatpush2.msra.mxu0 0.0
        %1571 = vmatprep.subr.mxu0 0.0
        %1572 = vmatpush2.msra.mxu0 0.0
        %1573 = vmatprep.subr.mxu0 0.0
        %1574 = vmatpush2.msra.mxu0 0.0
        %1575 = vmatprep.subr.mxu0 0.0
        %1576 = vmatpush2.msra.mxu0 0.0
        %1577 = vmatprep.subr.mxu0 0.0
        %1578 = vmatpush2.msra.mxu0 0.0
        %1579 = vmatprep.subr.mxu0 0.0
        %1580 = vmatpush2.msra.mxu0 0.0
        %1581 = vmatprep.subr.mxu0 0.0
        %1582 = vmatpush2.msra.mxu0 0.0
        %1583 = vmatprep.subr.mxu0 0.0
        %1584 = vmatpush2.msra.mxu0 0.0
        %1585 = vmatprep.subr.mxu0 0.0
        %1586 = vmatpush2.msra.mxu0 0.0
        %1587 = vmatprep.mubr.f32.mxu0 0.0
        %v1588 = vand.u32 %v247, 4294901760
        %1589 = vmatmul.mubr.f32.gmra.mxu0 %v1588
        %v1590 = vpop.f32.mrf.mxu0
        %v1591 = vadd.f32 %v1519, %v1590
        %v1592 = vpop.f32.mrf.mxu0
        %1593 = vdwg.mxu0
        %v1594 = vmax.f32 %v1591, 0.0
        %v1595 = vadd.f32 %v1145, %v1594
        %s1596 = scalar_lea.vmem %s198, 24 [#allocation2]
        %v1597 = vld [vmem:[%s1596] sm:$0xff]
        %1598 = vmatprep.subr.mxu0 0.0
        %1599 = vmatpush1.msra.mxu0 0.0
        %1600 = vmatprep.subr.mxu0 0.0
        %1601 = vmatpush1.msra.mxu0 0.0
        %1602 = vmatprep.subr.mxu0 0.0
        %1603 = vmatpush1.msra.mxu0 0.0
        %1604 = vmatprep.subr.mxu0 0.0
        %1605 = vmatpush1.msra.mxu0 0.0
        %1606 = vmatprep.subr.mxu0 0.0
        %1607 = vmatpush1.msra.mxu0 0.0
        %1608 = vmatprep.subr.mxu0 0.0
        %1609 = vmatpush1.msra.mxu0 0.0
        %1610 = vmatprep.subr.mxu0 0.0
        %1611 = vmatpush1.msra.mxu0 0.0
        %1612 = vmatprep.subr.mxu0 0.0
        %1613 = vmatpush1.msra.mxu0 0.0
        %1614 = vmatprep.subr.mxu0 0.0
        %1615 = vmatpush1.msra.mxu0 0.0
        %1616 = vmatprep.subr.mxu0 0.0
        %1617 = vmatpush1.msra.mxu0 0.0
        %1618 = vmatprep.subr.mxu0 0.0
        %1619 = vmatpush1.msra.mxu0 0.0
        %1620 = vmatprep.subr.mxu0 0.0
        %1621 = vmatpush1.msra.mxu0 0.0
        %1622 = vmatprep.subr.mxu0 0.0
        %1623 = vmatpush1.msra.mxu0 0.0
        %1624 = vmatprep.subr.mxu0 0.0
        %1625 = vmatpush1.msra.mxu0 0.0
        %1626 = vmatprep.subr.mxu0 0.0
        %1627 = vmatpush1.msra.mxu0 0.0
        %1628 = vmatprep.subr.mxu0 0.0
        %v1629 = vand.u32 %v1597, 4294901760
        %1630 = vmatpush1.msra.mxu0 %v1629
        %1631 = vmatprep.subr.mxu0 0.0
        %1632 = vmatpush2.msra.mxu0 0.0
        %1633 = vmatprep.subr.mxu0 0.0
        %1634 = vmatpush2.msra.mxu0 0.0
        %1635 = vmatprep.subr.mxu0 0.0
        %1636 = vmatpush2.msra.mxu0 0.0
        %1637 = vmatprep.subr.mxu0 0.0
        %1638 = vmatpush2.msra.mxu0 0.0
        %1639 = vmatprep.subr.mxu0 0.0
        %1640 = vmatpush2.msra.mxu0 0.0
        %1641 = vmatprep.subr.mxu0 0.0
        %1642 = vmatpush2.msra.mxu0 0.0
        %1643 = vmatprep.subr.mxu0 0.0
        %1644 = vmatpush2.msra.mxu0 0.0
        %1645 = vmatprep.subr.mxu0 0.0
        %1646 = vmatpush2.msra.mxu0 0.0
        %1647 = vmatprep.subr.mxu0 0.0
        %1648 = vmatpush2.msra.mxu0 0.0
        %1649 = vmatprep.subr.mxu0 0.0
        %1650 = vmatpush2.msra.mxu0 0.0
        %1651 = vmatprep.subr.mxu0 0.0
        %1652 = vmatpush2.msra.mxu0 0.0
        %1653 = vmatprep.subr.mxu0 0.0
        %1654 = vmatpush2.msra.mxu0 0.0
        %1655 = vmatprep.subr.mxu0 0.0
        %1656 = vmatpush2.msra.mxu0 0.0
        %1657 = vmatprep.subr.mxu0 0.0
        %1658 = vmatpush2.msra.mxu0 0.0
        %1659 = vmatprep.subr.mxu0 0.0
        %1660 = vmatpush2.msra.mxu0 0.0
        %1661 = vmatprep.subr.mxu0 0.0
        %1662 = vmatpush2.msra.mxu0 0.0
        %1663 = vmatprep.mubr.f32.mxu0 0.0
        %v1664 = vand.u32 %v247, 4294901760
        %v1665 = vsub.f32 %v247, %v1664
        %v1666 = vand.u32 %v1665, 4294901760
        %v1667 = vsub.f32 %v1665, %v1666
        %v1668 = vand.u32 %v1667, 4294901760
        %1669 = vmatmul.mubr.f32.gmra.mxu0 %v1668
        %v1670 = vpop.f32.mrf.mxu0
        %v1671 = vadd.f32 %v242, %v1670
        %v1672 = vpop.f32.mrf.mxu0
        %1673 = vdwg.mxu0
        %1674 = vmatprep.subr.mxu0 0.0
        %1675 = vmatpush1.msra.mxu0 0.0
        %1676 = vmatprep.subr.mxu0 0.0
        %1677 = vmatpush1.msra.mxu0 0.0
        %1678 = vmatprep.subr.mxu0 0.0
        %1679 = vmatpush1.msra.mxu0 0.0
        %1680 = vmatprep.subr.mxu0 0.0
        %1681 = vmatpush1.msra.mxu0 0.0
        %1682 = vmatprep.subr.mxu0 0.0
        %1683 = vmatpush1.msra.mxu0 0.0
        %1684 = vmatprep.subr.mxu0 0.0
        %1685 = vmatpush1.msra.mxu0 0.0
        %1686 = vmatprep.subr.mxu0 0.0
        %1687 = vmatpush1.msra.mxu0 0.0
        %1688 = vmatprep.subr.mxu0 0.0
        %1689 = vmatpush1.msra.mxu0 0.0
        %1690 = vmatprep.subr.mxu0 0.0
        %1691 = vmatpush1.msra.mxu0 0.0
        %1692 = vmatprep.subr.mxu0 0.0
        %1693 = vmatpush1.msra.mxu0 0.0
        %1694 = vmatprep.subr.mxu0 0.0
        %1695 = vmatpush1.msra.mxu0 0.0
        %1696 = vmatprep.subr.mxu0 0.0
        %1697 = vmatpush1.msra.mxu0 0.0
        %1698 = vmatprep.subr.mxu0 0.0
        %1699 = vmatpush1.msra.mxu0 0.0
        %1700 = vmatprep.subr.mxu0 0.0
        %1701 = vmatpush1.msra.mxu0 0.0
        %1702 = vmatprep.subr.mxu0 0.0
        %1703 = vmatpush1.msra.mxu0 0.0
        %1704 = vmatprep.subr.mxu0 0.0
        %v1705 = vand.u32 %v1597, 4294901760
        %v1706 = vsub.f32 %v1597, %v1705
        %v1707 = vand.u32 %v1706, 4294901760
        %v1708 = vsub.f32 %v1706, %v1707
        %v1709 = vand.u32 %v1708, 4294901760
        %1710 = vmatpush1.msra.mxu0 %v1709
        %1711 = vmatprep.subr.mxu0 0.0
        %1712 = vmatpush2.msra.mxu0 0.0
        %1713 = vmatprep.subr.mxu0 0.0
        %1714 = vmatpush2.msra.mxu0 0.0
        %1715 = vmatprep.subr.mxu0 0.0
        %1716 = vmatpush2.msra.mxu0 0.0
        %1717 = vmatprep.subr.mxu0 0.0
        %1718 = vmatpush2.msra.mxu0 0.0
        %1719 = vmatprep.subr.mxu0 0.0
        %1720 = vmatpush2.msra.mxu0 0.0
        %1721 = vmatprep.subr.mxu0 0.0
        %1722 = vmatpush2.msra.mxu0 0.0
        %1723 = vmatprep.subr.mxu0 0.0
        %1724 = vmatpush2.msra.mxu0 0.0
        %1725 = vmatprep.subr.mxu0 0.0
        %1726 = vmatpush2.msra.mxu0 0.0
        %1727 = vmatprep.subr.mxu0 0.0
        %1728 = vmatpush2.msra.mxu0 0.0
        %1729 = vmatprep.subr.mxu0 0.0
        %1730 = vmatpush2.msra.mxu0 0.0
        %1731 = vmatprep.subr.mxu0 0.0
        %1732 = vmatpush2.msra.mxu0 0.0
        %1733 = vmatprep.subr.mxu0 0.0
        %1734 = vmatpush2.msra.mxu0 0.0
        %1735 = vmatprep.subr.mxu0 0.0
        %1736 = vmatpush2.msra.mxu0 0.0
        %1737 = vmatprep.subr.mxu0 0.0
        %1738 = vmatpush2.msra.mxu0 0.0
        %1739 = vmatprep.subr.mxu0 0.0
        %1740 = vmatpush2.msra.mxu0 0.0
        %1741 = vmatprep.subr.mxu0 0.0
        %1742 = vmatpush2.msra.mxu0 0.0
        %1743 = vmatprep.mubr.f32.mxu0 0.0
        %v1744 = vand.u32 %v247, 4294901760
        %1745 = vmatmul.mubr.f32.gmra.mxu0 %v1744
        %v1746 = vpop.f32.mrf.mxu0
        %v1747 = vadd.f32 %v1671, %v1746
        %v1748 = vpop.f32.mrf.mxu0
        %1749 = vdwg.mxu0
        %1750 = vmatprep.subr.mxu0 0.0
        %1751 = vmatpush1.msra.mxu0 0.0
        %1752 = vmatprep.subr.mxu0 0.0
        %1753 = vmatpush1.msra.mxu0 0.0
        %1754 = vmatprep.subr.mxu0 0.0
        %1755 = vmatpush1.msra.mxu0 0.0
        %1756 = vmatprep.subr.mxu0 0.0
        %1757 = vmatpush1.msra.mxu0 0.0
        %1758 = vmatprep.subr.mxu0 0.0
        %1759 = vmatpush1.msra.mxu0 0.0
        %1760 = vmatprep.subr.mxu0 0.0
        %1761 = vmatpush1.msra.mxu0 0.0
        %1762 = vmatprep.subr.mxu0 0.0
        %1763 = vmatpush1.msra.mxu0 0.0
        %1764 = vmatprep.subr.mxu0 0.0
        %1765 = vmatpush1.msra.mxu0 0.0
        %1766 = vmatprep.subr.mxu0 0.0
        %1767 = vmatpush1.msra.mxu0 0.0
        %1768 = vmatprep.subr.mxu0 0.0
        %1769 = vmatpush1.msra.mxu0 0.0
        %1770 = vmatprep.subr.mxu0 0.0
        %1771 = vmatpush1.msra.mxu0 0.0
        %1772 = vmatprep.subr.mxu0 0.0
        %1773 = vmatpush1.msra.mxu0 0.0
        %1774 = vmatprep.subr.mxu0 0.0
        %1775 = vmatpush1.msra.mxu0 0.0
        %1776 = vmatprep.subr.mxu0 0.0
        %1777 = vmatpush1.msra.mxu0 0.0
        %1778 = vmatprep.subr.mxu0 0.0
        %1779 = vmatpush1.msra.mxu0 0.0
        %1780 = vmatprep.subr.mxu0 0.0
        %v1781 = vand.u32 %v1597, 4294901760
        %v1782 = vsub.f32 %v1597, %v1781
        %1783 = vmatpush1.msra.mxu0 %v1782
        %1784 = vmatprep.subr.mxu0 0.0
        %1785 = vmatpush2.msra.mxu0 0.0
        %1786 = vmatprep.subr.mxu0 0.0
        %1787 = vmatpush2.msra.mxu0 0.0
        %1788 = vmatprep.subr.mxu0 0.0
        %1789 = vmatpush2.msra.mxu0 0.0
        %1790 = vmatprep.subr.mxu0 0.0
        %1791 = vmatpush2.msra.mxu0 0.0
        %1792 = vmatprep.subr.mxu0 0.0
        %1793 = vmatpush2.msra.mxu0 0.0
        %1794 = vmatprep.subr.mxu0 0.0
        %1795 = vmatpush2.msra.mxu0 0.0
        %1796 = vmatprep.subr.mxu0 0.0
        %1797 = vmatpush2.msra.mxu0 0.0
        %1798 = vmatprep.subr.mxu0 0.0
        %1799 = vmatpush2.msra.mxu0 0.0
        %1800 = vmatprep.subr.mxu0 0.0
        %1801 = vmatpush2.msra.mxu0 0.0
        %1802 = vmatprep.subr.mxu0 0.0
        %1803 = vmatpush2.msra.mxu0 0.0
        %1804 = vmatprep.subr.mxu0 0.0
        %1805 = vmatpush2.msra.mxu0 0.0
        %1806 = vmatprep.subr.mxu0 0.0
        %1807 = vmatpush2.msra.mxu0 0.0
        %1808 = vmatprep.subr.mxu0 0.0
        %1809 = vmatpush2.msra.mxu0 0.0
        %1810 = vmatprep.subr.mxu0 0.0
        %1811 = vmatpush2.msra.mxu0 0.0
        %1812 = vmatprep.subr.mxu0 0.0
        %1813 = vmatpush2.msra.mxu0 0.0
        %1814 = vmatprep.subr.mxu0 0.0
        %1815 = vmatpush2.msra.mxu0 0.0
        %1816 = vmatprep.mubr.f32.mxu0 0.0
        %v1817 = vand.u32 %v247, 4294901760
        %v1818 = vsub.f32 %v247, %v1817
        %1819 = vmatmul.mubr.f32.gmra.mxu0 %v1818
        %v1820 = vpop.f32.mrf.mxu0
        %v1821 = vadd.f32 %v1747, %v1820
        %v1822 = vpop.f32.mrf.mxu0
        %1823 = vdwg.mxu0
        %1824 = vmatprep.subr.mxu0 0.0
        %1825 = vmatpush1.msra.mxu0 0.0
        %1826 = vmatprep.subr.mxu0 0.0
        %1827 = vmatpush1.msra.mxu0 0.0
        %1828 = vmatprep.subr.mxu0 0.0
        %1829 = vmatpush1.msra.mxu0 0.0
        %1830 = vmatprep.subr.mxu0 0.0
        %1831 = vmatpush1.msra.mxu0 0.0
        %1832 = vmatprep.subr.mxu0 0.0
        %1833 = vmatpush1.msra.mxu0 0.0
        %1834 = vmatprep.subr.mxu0 0.0
        %1835 = vmatpush1.msra.mxu0 0.0
        %1836 = vmatprep.subr.mxu0 0.0
        %1837 = vmatpush1.msra.mxu0 0.0
        %1838 = vmatprep.subr.mxu0 0.0
        %1839 = vmatpush1.msra.mxu0 0.0
        %1840 = vmatprep.subr.mxu0 0.0
        %1841 = vmatpush1.msra.mxu0 0.0
        %1842 = vmatprep.subr.mxu0 0.0
        %1843 = vmatpush1.msra.mxu0 0.0
        %1844 = vmatprep.subr.mxu0 0.0
        %1845 = vmatpush1.msra.mxu0 0.0
        %1846 = vmatprep.subr.mxu0 0.0
        %1847 = vmatpush1.msra.mxu0 0.0
        %1848 = vmatprep.subr.mxu0 0.0
        %1849 = vmatpush1.msra.mxu0 0.0
        %1850 = vmatprep.subr.mxu0 0.0
        %1851 = vmatpush1.msra.mxu0 0.0
        %1852 = vmatprep.subr.mxu0 0.0
        %1853 = vmatpush1.msra.mxu0 0.0
        %1854 = vmatprep.subr.mxu0 0.0
        %v1855 = vand.u32 %v1597, 4294901760
        %1856 = vmatpush1.msra.mxu0 %v1855
        %1857 = vmatprep.subr.mxu0 0.0
        %1858 = vmatpush2.msra.mxu0 0.0
        %1859 = vmatprep.subr.mxu0 0.0
        %1860 = vmatpush2.msra.mxu0 0.0
        %1861 = vmatprep.subr.mxu0 0.0
        %1862 = vmatpush2.msra.mxu0 0.0
        %1863 = vmatprep.subr.mxu0 0.0
        %1864 = vmatpush2.msra.mxu0 0.0
        %1865 = vmatprep.subr.mxu0 0.0
        %1866 = vmatpush2.msra.mxu0 0.0
        %1867 = vmatprep.subr.mxu0 0.0
        %1868 = vmatpush2.msra.mxu0 0.0
        %1869 = vmatprep.subr.mxu0 0.0
        %1870 = vmatpush2.msra.mxu0 0.0
        %1871 = vmatprep.subr.mxu0 0.0
        %1872 = vmatpush2.msra.mxu0 0.0
        %1873 = vmatprep.subr.mxu0 0.0
        %1874 = vmatpush2.msra.mxu0 0.0
        %1875 = vmatprep.subr.mxu0 0.0
        %1876 = vmatpush2.msra.mxu0 0.0
        %1877 = vmatprep.subr.mxu0 0.0
        %1878 = vmatpush2.msra.mxu0 0.0
        %1879 = vmatprep.subr.mxu0 0.0
        %1880 = vmatpush2.msra.mxu0 0.0
        %1881 = vmatprep.subr.mxu0 0.0
        %1882 = vmatpush2.msra.mxu0 0.0
        %1883 = vmatprep.subr.mxu0 0.0
        %1884 = vmatpush2.msra.mxu0 0.0
        %1885 = vmatprep.subr.mxu0 0.0
        %1886 = vmatpush2.msra.mxu0 0.0
        %1887 = vmatprep.subr.mxu0 0.0
        %1888 = vmatpush2.msra.mxu0 0.0
        %1889 = vmatprep.mubr.f32.mxu0 0.0
        %v1890 = vand.u32 %v247, 4294901760
        %v1891 = vsub.f32 %v247, %v1890
        %v1892 = vand.u32 %v1891, 4294901760
        %1893 = vmatmul.mubr.f32.gmra.mxu0 %v1892
        %v1894 = vpop.f32.mrf.mxu0
        %v1895 = vadd.f32 %v1821, %v1894
        %v1896 = vpop.f32.mrf.mxu0
        %1897 = vdwg.mxu0
        %1898 = vmatprep.subr.mxu0 0.0
        %1899 = vmatpush1.msra.mxu0 0.0
        %1900 = vmatprep.subr.mxu0 0.0
        %1901 = vmatpush1.msra.mxu0 0.0
        %1902 = vmatprep.subr.mxu0 0.0
        %1903 = vmatpush1.msra.mxu0 0.0
        %1904 = vmatprep.subr.mxu0 0.0
        %1905 = vmatpush1.msra.mxu0 0.0
        %1906 = vmatprep.subr.mxu0 0.0
        %1907 = vmatpush1.msra.mxu0 0.0
        %1908 = vmatprep.subr.mxu0 0.0
        %1909 = vmatpush1.msra.mxu0 0.0
        %1910 = vmatprep.subr.mxu0 0.0
        %1911 = vmatpush1.msra.mxu0 0.0
        %1912 = vmatprep.subr.mxu0 0.0
        %1913 = vmatpush1.msra.mxu0 0.0
        %1914 = vmatprep.subr.mxu0 0.0
        %1915 = vmatpush1.msra.mxu0 0.0
        %1916 = vmatprep.subr.mxu0 0.0
        %1917 = vmatpush1.msra.mxu0 0.0
        %1918 = vmatprep.subr.mxu0 0.0
        %1919 = vmatpush1.msra.mxu0 0.0
        %1920 = vmatprep.subr.mxu0 0.0
        %1921 = vmatpush1.msra.mxu0 0.0
        %1922 = vmatprep.subr.mxu0 0.0
        %1923 = vmatpush1.msra.mxu0 0.0
        %1924 = vmatprep.subr.mxu0 0.0
        %1925 = vmatpush1.msra.mxu0 0.0
        %1926 = vmatprep.subr.mxu0 0.0
        %1927 = vmatpush1.msra.mxu0 0.0
        %1928 = vmatprep.subr.mxu0 0.0
        %v1929 = vand.u32 %v1597, 4294901760
        %v1930 = vsub.f32 %v1597, %v1929
        %v1931 = vand.u32 %v1930, 4294901760
        %1932 = vmatpush1.msra.mxu0 %v1931
        %1933 = vmatprep.subr.mxu0 0.0
        %1934 = vmatpush2.msra.mxu0 0.0
        %1935 = vmatprep.subr.mxu0 0.0
        %1936 = vmatpush2.msra.mxu0 0.0
        %1937 = vmatprep.subr.mxu0 0.0
        %1938 = vmatpush2.msra.mxu0 0.0
        %1939 = vmatprep.subr.mxu0 0.0
        %1940 = vmatpush2.msra.mxu0 0.0
        %1941 = vmatprep.subr.mxu0 0.0
        %1942 = vmatpush2.msra.mxu0 0.0
        %1943 = vmatprep.subr.mxu0 0.0
        %1944 = vmatpush2.msra.mxu0 0.0
        %1945 = vmatprep.subr.mxu0 0.0
        %1946 = vmatpush2.msra.mxu0 0.0
        %1947 = vmatprep.subr.mxu0 0.0
        %1948 = vmatpush2.msra.mxu0 0.0
        %1949 = vmatprep.subr.mxu0 0.0
        %1950 = vmatpush2.msra.mxu0 0.0
        %1951 = vmatprep.subr.mxu0 0.0
        %1952 = vmatpush2.msra.mxu0 0.0
        %1953 = vmatprep.subr.mxu0 0.0
        %1954 = vmatpush2.msra.mxu0 0.0
        %1955 = vmatprep.subr.mxu0 0.0
        %1956 = vmatpush2.msra.mxu0 0.0
        %1957 = vmatprep.subr.mxu0 0.0
        %1958 = vmatpush2.msra.mxu0 0.0
        %1959 = vmatprep.subr.mxu0 0.0
        %1960 = vmatpush2.msra.mxu0 0.0
        %1961 = vmatprep.subr.mxu0 0.0
        %1962 = vmatpush2.msra.mxu0 0.0
        %1963 = vmatprep.subr.mxu0 0.0
        %1964 = vmatpush2.msra.mxu0 0.0
        %1965 = vmatprep.mubr.f32.mxu0 0.0
        %v1966 = vand.u32 %v247, 4294901760
        %1967 = vmatmul.mubr.f32.gmra.mxu0 %v1966
        %v1968 = vpop.f32.mrf.mxu0
        %v1969 = vadd.f32 %v1895, %v1968
        %v1970 = vpop.f32.mrf.mxu0
        %1971 = vdwg.mxu0
        %1972 = vmatprep.subr.mxu0 0.0
        %1973 = vmatpush1.msra.mxu0 0.0
        %1974 = vmatprep.subr.mxu0 0.0
        %1975 = vmatpush1.msra.mxu0 0.0
        %1976 = vmatprep.subr.mxu0 0.0
        %1977 = vmatpush1.msra.mxu0 0.0
        %1978 = vmatprep.subr.mxu0 0.0
        %1979 = vmatpush1.msra.mxu0 0.0
        %1980 = vmatprep.subr.mxu0 0.0
        %1981 = vmatpush1.msra.mxu0 0.0
        %1982 = vmatprep.subr.mxu0 0.0
        %1983 = vmatpush1.msra.mxu0 0.0
        %1984 = vmatprep.subr.mxu0 0.0
        %1985 = vmatpush1.msra.mxu0 0.0
        %1986 = vmatprep.subr.mxu0 0.0
        %1987 = vmatpush1.msra.mxu0 0.0
        %1988 = vmatprep.subr.mxu0 0.0
        %1989 = vmatpush1.msra.mxu0 0.0
        %1990 = vmatprep.subr.mxu0 0.0
        %1991 = vmatpush1.msra.mxu0 0.0
        %1992 = vmatprep.subr.mxu0 0.0
        %1993 = vmatpush1.msra.mxu0 0.0
        %1994 = vmatprep.subr.mxu0 0.0
        %1995 = vmatpush1.msra.mxu0 0.0
        %1996 = vmatprep.subr.mxu0 0.0
        %1997 = vmatpush1.msra.mxu0 0.0
        %1998 = vmatprep.subr.mxu0 0.0
        %1999 = vmatpush1.msra.mxu0 0.0
        %2000 = vmatprep.subr.mxu0 0.0
        %2001 = vmatpush1.msra.mxu0 0.0
        %2002 = vmatprep.subr.mxu0 0.0
        %v2003 = vand.u32 %v1597, 4294901760
        %2004 = vmatpush1.msra.mxu0 %v2003
        %2005 = vmatprep.subr.mxu0 0.0
        %2006 = vmatpush2.msra.mxu0 0.0
        %2007 = vmatprep.subr.mxu0 0.0
        %2008 = vmatpush2.msra.mxu0 0.0
        %2009 = vmatprep.subr.mxu0 0.0
        %2010 = vmatpush2.msra.mxu0 0.0
        %2011 = vmatprep.subr.mxu0 0.0
        %2012 = vmatpush2.msra.mxu0 0.0
        %2013 = vmatprep.subr.mxu0 0.0
        %2014 = vmatpush2.msra.mxu0 0.0
        %2015 = vmatprep.subr.mxu0 0.0
        %2016 = vmatpush2.msra.mxu0 0.0
        %2017 = vmatprep.subr.mxu0 0.0
        %2018 = vmatpush2.msra.mxu0 0.0
        %2019 = vmatprep.subr.mxu0 0.0
        %2020 = vmatpush2.msra.mxu0 0.0
        %2021 = vmatprep.subr.mxu0 0.0
        %2022 = vmatpush2.msra.mxu0 0.0
        %2023 = vmatprep.subr.mxu0 0.0
        %2024 = vmatpush2.msra.mxu0 0.0
        %2025 = vmatprep.subr.mxu0 0.0
        %2026 = vmatpush2.msra.mxu0 0.0
        %2027 = vmatprep.subr.mxu0 0.0
        %2028 = vmatpush2.msra.mxu0 0.0
        %2029 = vmatprep.subr.mxu0 0.0
        %2030 = vmatpush2.msra.mxu0 0.0
        %2031 = vmatprep.subr.mxu0 0.0
        %2032 = vmatpush2.msra.mxu0 0.0
        %2033 = vmatprep.subr.mxu0 0.0
        %2034 = vmatpush2.msra.mxu0 0.0
        %2035 = vmatprep.subr.mxu0 0.0
        %2036 = vmatpush2.msra.mxu0 0.0
        %2037 = vmatprep.mubr.f32.mxu0 0.0
        %v2038 = vand.u32 %v247, 4294901760
        %2039 = vmatmul.mubr.f32.gmra.mxu0 %v2038
        %v2040 = vpop.f32.mrf.mxu0
        %v2041 = vadd.f32 %v1969, %v2040
        %v2042 = vpop.f32.mrf.mxu0
        %2043 = vdwg.mxu0
        %v2044 = vmax.f32 %v2041, 0.0
        %v2045 = vadd.f32 %v1595, %v2044
        %v2046 = vmul.f32 %v2045, 0.25
        %vm2047 = vcmask 519168
        %2048 = vst.msk [vmem:[%s228] sm:$0xf] %vm2047, %v2046
        %s2049 = sand.u32 %s120, 1
        %s2050 = scalar_lea.sflag [#allocation4], %s2049
        %s2051 = sand.u32 %s120, 1
        %s2052 = smul.addr %s2051, 4
        %s2053 = scalar_lea.vmem [#allocation5], %s2052
        // Predicated region
        $region37: #{tpu_custom_call.1} parent=31 // pred_check
          %p2054 = pneg %p130
        $region38: #{tpu_custom_call.1} parent=31 // pred_check_branch
          %2056 = sbr.rel (%p2054) target = $region40
        $region39: #{tpu_custom_call.1} parent=31 // pred_region
          %s2058 = ssub.s32 64, 64
          %2059 = vsyncadd %s2050, %s2058
          %s2060 = sadd.s32 %s25, %s24
          %s2061 = smul.addr %s2060, 64
          %s2062 = scalar_lea.hbm %s3, %s2061
          %s2064 = sshll.u32 %s2053, 4
          %s2065 = int_to_ptr.vmem [resolvable:$true] %s2064
          %2067 = dma.vmem_to_hbm [thread:$0]  %s2065, 64, %s2062, %s2050
        $region40: #{tpu_custom_call.1} parent=31 // pred_fallthru
          _
      $region32: #{tpu_custom_call.1} parent=5 // pred_fallthru
        _
      %p2068 = scmp.le.s32.totalorder 2, %s15
      // Predicated region
      $region41: #{tpu_custom_call.1} parent=5 // pred_check
        %p2069 = pneg %p2068
      $region42: #{tpu_custom_call.1} parent=5 // pred_check_branch
        %2071 = sbr.rel (%p2069) target = $region44
      $region43: #{tpu_custom_call.1} parent=5 // pred_region
        %s2072 = ssub.s32 %s15, 2
        // Predicated region
        $region45: #{tpu_custom_call.1} parent=43 // pred_check
          %p2073 = pneg %p136
        $region46: #{tpu_custom_call.1} parent=43 // pred_check_branch
          %2075 = sbr.rel (%p2073) target = $region48
        $region47: #{tpu_custom_call.1} parent=43 // pred_region
          %s2076 = sand.u32 %s121, 1
          %s2077 = scalar_lea.sflag [#allocation4], %s2076
          %s2078 = sand.u32 %s121, 1
          %s2079 = smul.addr %s2078, 4
          %s2080 = scalar_lea.vmem [#allocation5], %s2079
          %2081 = dma.done %s2077, 64
        $region48: #{tpu_custom_call.1} parent=43 // pred_fallthru
          _
      $region44: #{tpu_custom_call.1} parent=5 // pred_fallthru
        _
    $region6: #{tpu_custom_call.1} parent=1 // loop_footer
      %s19 = sadd.s32 1, %s15
    $region7: #{tpu_custom_call.1} parent=1 // loop_footer_branch
      %14 = sbr.rel target = $region3
    $region8: #{tpu_custom_call.1} parent=1 // loop_exit
      _
    %2082 = vsyncpa [#allocation3], 1
    %s2083 = scalar_lea.sflag [#allocation3], 1
    %2084 = vsyncpa %s2083, 1
    %2085 = vsyncpa [#allocation4], 1
    %s2086 = scalar_lea.sflag [#allocation4], 1
    %2087 = vsyncpa %s2086, 1

</llo_original>
